<compile_context>
chip_gen: v5e
topology: v5e:2x2
jax: 0.10.0
libtpu: 0.0.40
codegen_flags: <defaults>
</compile_context>

<pallas_src>
import jax
import jax.numpy as jnp
from jax import lax
from jax.experimental import pallas as pl
from jax.experimental.pallas import tpu as pltpu

H = W = 7
HW = H * W
C_IN = 160           # conv2d45 in-channels / conv2d47 out-channels
C_MID = 960          # expanded channels
C_MID_PAD = 1024     # padded to a lane multiple
C_OUT_PAD = 256      # padded output channels (sliced back to 160 in wrapper)
CHUNK = 256          # lane chunk over the expanded channels (4 grid steps)
N_CHUNK = C_MID_PAD // CHUNK
EPS = 1e-5


# ----------------------------- kernel helpers -----------------------------
def _bn_relu6(y, gamma, beta):
    """PyTorch BatchNorm2d (train mode) + ReLU6, per-channel over rows.

    One-pass statistics (sum and sum-of-squares, f32), applied as fused
    y*scale + shift with [1, C] vectors.
    """
    inv_n = 1.0 / HW
    mean = jnp.sum(y, axis=0, keepdims=True) * inv_n          # [1, C]
    ex2 = jnp.sum(y * y, axis=0, keepdims=True) * inv_n       # [1, C]
    var = ex2 - mean * mean                                    # biased variance
    scale = gamma * lax.rsqrt(var + EPS)                       # [1, C]
    shift = beta - mean * scale
    return jnp.clip(y * scale + shift, 0.0, 6.0)


# --------------------------------- kernel ----------------------------------
def mbconv_kernel(x_ref, sh_ref, w1_ref, g1_ref, b1_ref,
                  wd_ref, g2_ref, b2_ref, w3_ref, out_ref, acc_ref):
    c = pl.program_id(0)

    @pl.when(c == 0)
    def _():
        acc_ref[...] = jnp.zeros_like(acc_ref)

    # ---- conv2d45 (1x1 expand, 160 -> CHUNK of 960): bf16 MXU, f32 acc ----
    y = jnp.dot(x_ref[...], w1_ref[...],
                preferred_element_type=jnp.float32)            # [HW, CHUNK]

    # ---- batchnorm2d45 + relu6 ----
    y = _bn_relu6(y, g1_ref[...], b1_ref[...])

    # ---- conv2d46 (3x3 depthwise, pad=1) ----
    # Spatial +-1 / +-W row shifts (with boundary zero-fill) expressed as
    # [HW, HW] 0/1 matmuls on the MXU; tap combine stays on the VPU.
    s_l = sh_ref[0]                                            # left neighbor
    s_r = sh_ref[1]                                            # right neighbor
    s_u = sh_ref[2]                                            # row above (shift down by W)
    s_d = sh_ref[3]                                            # row below (shift up by W)
    h_l = jnp.dot(s_l, y, preferred_element_type=jnp.float32)  # y[r-1] (masked)
    h_r = jnp.dot(s_r, y, preferred_element_type=jnp.float32)  # y[r+1] (masked)

    t = wd_ref[...]                                            # [9, CHUNK] taps
    d = h_l * t[3:4] + y * t[4:5] + h_r * t[5:6]               # ky = 1 (dy = 0)
    s_top = h_l * t[0:1] + y * t[1:2] + h_r * t[2:3]           # ky = 0 (dy = -1)
    d = d + jnp.dot(s_u, s_top, preferred_element_type=jnp.float32)
    s_bot = h_l * t[6:7] + y * t[7:8] + h_r * t[8:9]           # ky = 2 (dy = +1)
    d = d + jnp.dot(s_d, s_bot, preferred_element_type=jnp.float32)

    # ---- batchnorm2d46 + relu6 ----
    z = _bn_relu6(d, g2_ref[...], b2_ref[...])

    # ---- conv2d47 (1x1 project, CHUNK of 960 -> 160 (padded 256)) ----
    acc_ref[...] += jnp.dot(z.astype(jnp.bfloat16), w3_ref[...],
                            preferred_element_type=jnp.float32)

    @pl.when(c == pl.num_programs(0) - 1)
    def _():
        out_ref[...] = acc_ref[...]


# -------------------------------- wrappers ----------------------------------
def prepare_params(w1, g1, b1, wd, g2, b2, w3):
    """One-time static weight relayout + lane padding (outside the hot path).

    NOTE: padded gamma/beta entries are ZERO so the padded channels stay
    exactly zero through both BN stages (padding gamma with ones would break).
    """
    pad = C_MID_PAD - C_MID
    w1p = jnp.pad(w1[:, :, 0, 0].T, ((0, 0), (0, pad))).astype(jnp.bfloat16)
    wdp = jnp.pad(jnp.transpose(wd[:, 0], (1, 2, 0)).reshape(9, C_MID),
                  ((0, 0), (0, pad))).astype(jnp.float32)
    g1p = jnp.pad(g1, (0, pad)).reshape(1, C_MID_PAD).astype(jnp.float32)
    b1p = jnp.pad(b1, (0, pad)).reshape(1, C_MID_PAD).astype(jnp.float32)
    g2p = jnp.pad(g2, (0, pad)).reshape(1, C_MID_PAD).astype(jnp.float32)
    b2p = jnp.pad(b2, (0, pad)).reshape(1, C_MID_PAD).astype(jnp.float32)
    w3p = jnp.pad(w3[:, :, 0, 0].T,
                  ((0, pad), (0, C_OUT_PAD - C_IN))).astype(jnp.bfloat16)

    # 0/1 spatial shift matrices for the depthwise conv (exact, stay in f32):
    #   sl[i,j]=1 iff j==i-1 and col(i)>=1      (value from the left)
    #   sr[i,j]=1 iff j==i+1 and col(i)<=W-2    (value from the right)
    #   su[i,j]=1 iff j==i-W                    (row above, zero-fill at top)
    #   sd[i,j]=1 iff j==i+W                    (row below, zero-fill at bottom)
    r = jnp.arange(HW)
    col = r % W
    sl = ((r[None, :] == r[:, None] - 1) & (col[:, None] >= 1)).astype(jnp.float32)
    sr = ((r[None, :] == r[:, None] + 1) & (col[:, None] <= W - 2)).astype(jnp.float32)
    su = (r[None, :] == r[:, None] - W).astype(jnp.float32)
    sd = (r[None, :] == r[:, None] + W).astype(jnp.float32)
    shifts = jnp.stack([sl, sr, su, sd], axis=0)               # [4, HW, HW]
    return shifts, w1p, g1p, b1p, wdp, g2p, b2p, w3p


@jax.jit
def mbconv_pallas(x_nchw, shifts, w1p, g1p, b1p, wdp, g2p, b2p, w3p):
    # Kernel is specialized to batch N=1 (the module's input shape).
    assert x_nchw.shape == (1, C_IN, H, W), x_nchw.shape
    # x: [1, C_IN, H, W] -> [HW, C_IN] bf16 (channels-last, flattened)
    x2d = jnp.transpose(x_nchw[0], (1, 2, 0)).reshape(HW, C_IN).astype(jnp.bfloat16)

    out2d = pl.pallas_call(
        mbconv_kernel,
        out_shape=jax.ShapeDtypeStruct((HW, C_OUT_PAD), jnp.float32),
        grid=(N_CHUNK,),
        in_specs=[
            pl.BlockSpec((HW, C_IN), lambda c: (0, 0)),           # x (resident)
            pl.BlockSpec((4, HW, HW), lambda c: (0, 0, 0)),       # shift mats (resident)
            pl.BlockSpec((C_IN, CHUNK), lambda c: (0, c)),        # w1 chunk
            pl.BlockSpec((1, CHUNK), lambda c: (0, c)),           # gamma1 chunk
            pl.BlockSpec((1, CHUNK), lambda c: (0, c)),           # beta1 chunk
            pl.BlockSpec((9, CHUNK), lambda c: (0, c)),           # dw taps chunk
            pl.BlockSpec((1, CHUNK), lambda c: (0, c)),           # gamma2 chunk
            pl.BlockSpec((1, CHUNK), lambda c: (0, c)),           # beta2 chunk
            pl.BlockSpec((CHUNK, C_OUT_PAD), lambda c: (c, 0)),   # w3 chunk
        ],
        out_specs=pl.BlockSpec((HW, C_OUT_PAD), lambda c: (0, 0)),
        scratch_shapes=[pltpu.VMEM((HW, C_OUT_PAD), jnp.float32)],
        compiler_params=pltpu.CompilerParams(
            dimension_semantics=("arbitrary",)),
    )(x2d, shifts, w1p, g1p, b1p, wdp, g2p, b2p, w3p)

    # back to NCHW [1, C_IN, H, W]
    out = out2d[:, :C_IN].reshape(H, W, C_IN)
    return jnp.transpose(out, (2, 0, 1))[None]


# ------------------------- plain-JAX reference ------------------------------
def ref_forward(x, w1, g1, b1, wd, g2, b2, w3):
    def bn(y, g, b):
        mean = jnp.mean(y, axis=(0, 2, 3), keepdims=True)
        var = jnp.mean((y - mean) ** 2, axis=(0, 2, 3), keepdims=True)
        return (y - mean) * lax.rsqrt(var + EPS) * g.reshape(1, -1, 1, 1) \
            + b.reshape(1, -1, 1, 1)

    def conv(a, w, padding, groups=1):
        dn = lax.conv_dimension_numbers(a.shape, w.shape, ('NCHW', 'OIHW', 'NCHW'))
        return lax.conv_general_dilated(a, w, (1, 1), padding,
                                        dimension_numbers=dn,
                                        feature_group_count=groups,
                                        precision=lax.Precision.HIGHEST)

    y = jnp.clip(bn(conv(x, w1, 'VALID'), g1, b1), 0.0, 6.0)
    z = jnp.clip(bn(conv(y, wd, ((1, 1), (1, 1)), groups=C_MID), g2, b2), 0.0, 6.0)
    return conv(z, w3, 'VALID')


# ---------------------------------- main ------------------------------------
if __name__ == "__main__":
    key = jax.random.PRNGKey(0)
    kx, k1, kd, k3 = jax.random.split(key, 4)

    # deterministic example input + parameters (shapes from the module __init__)
    x = jax.random.normal(kx, (1, C_IN, H, W), jnp.float32)
    w1 = jax.random.normal(k1, (C_MID, C_IN, 1, 1), jnp.float32) / jnp.sqrt(C_IN)
    wd = jax.random.normal(kd, (C_MID, 1, 3, 3), jnp.float32) / 3.0
    w3 = jax.random.normal(k3, (C_IN, C_MID, 1, 1), jnp.float32) / jnp.sqrt(C_MID)
    g1 = jnp.ones((C_MID,), jnp.float32)   # BatchNorm2d default init: weight=1
    b1 = jnp.zeros((C_MID,), jnp.float32)  # bias=0
    g2 = jnp.ones((C_MID,), jnp.float32)
    b2 = jnp.zeros((C_MID,), jnp.float32)

    # static weight prep happens once, outside the per-call hot path
    params = prepare_params(w1, g1, b1, wd, g2, b2, w3)
    params = jax.block_until_ready(params)

    out = mbconv_pallas(x, *params)
    out = jax.block_until_ready(out)
    assert out.shape == (1, C_IN, H, W), out.shape

    ref = jax.block_until_ready(ref_forward(x, w1, g1, b1, wd, g2, b2, w3))
    max_err = float(jnp.max(jnp.abs(out - ref)))
    assert max_err < 5e-2, f"mismatch vs reference: max_err={max_err}"

    print("KERNEL_OK")
</pallas_src>

<mosaic_0001>
module attributes {stable_mosaic.version = 11 : i64} {
  func.func @mbconv_kernel(%arg0: i32, %arg1: memref<49x160xbf16, #tpu.memory_space<vmem>>, %arg2: memref<4x49x49xf32, #tpu.memory_space<vmem>>, %arg3: memref<160x256xbf16, #tpu.memory_space<vmem>>, %arg4: memref<1x256xf32, #tpu.memory_space<vmem>>, %arg5: memref<1x256xf32, #tpu.memory_space<vmem>>, %arg6: memref<9x256xf32, #tpu.memory_space<vmem>>, %arg7: memref<1x256xf32, #tpu.memory_space<vmem>>, %arg8: memref<1x256xf32, #tpu.memory_space<vmem>>, %arg9: memref<256x256xbf16, #tpu.memory_space<vmem>>, %arg10: memref<49x256xf32, #tpu.memory_space<vmem>>, %arg11: memref<49x256xf32, #tpu.memory_space<vmem>>) attributes {dimension_semantics = [#tpu.dimension_semantics<arbitrary>], iteration_bounds = array<i64: 4>, scalar_prefetch = 0 : i64, scratch_operands = 1 : i64, tpu.core_type = #tpu.core_type<tc>, window_params = [{pipeline_mode = #tpu.pipeline_mode<synchronous>, transform_indices = @transform_0, window_bounds = array<i64: 49, 160>}, {pipeline_mode = #tpu.pipeline_mode<synchronous>, transform_indices = @transform_1, window_bounds = array<i64: 4, 49, 49>}, {transform_indices = @transform_2, window_bounds = array<i64: 160, 256>}, {transform_indices = @transform_3, window_bounds = array<i64: 1, 256>}, {transform_indices = @transform_4, window_bounds = array<i64: 1, 256>}, {transform_indices = @transform_5, window_bounds = array<i64: 9, 256>}, {transform_indices = @transform_6, window_bounds = array<i64: 1, 256>}, {transform_indices = @transform_7, window_bounds = array<i64: 1, 256>}, {transform_indices = @transform_8, window_bounds = array<i64: 256, 256>}, {pipeline_mode = #tpu.pipeline_mode<synchronous>, transform_indices = @transform_9, window_bounds = array<i64: 49, 256>}]} {
    %c0_i32 = arith.constant 0 : i32
    %0 = arith.cmpi eq, %arg0, %c0_i32 : i32
    %1 = arith.extui %0 : i1 to i32
    %c0_i32_0 = arith.constant 0 : i32
    %2 = arith.cmpi ne, %1, %c0_i32_0 : i32
    scf.if %2 {
      %cst_49 = arith.constant 0.000000e+00 : f32
      %117 = vector.broadcast %cst_49 : f32 to vector<49x256xf32>
      %c0_50 = arith.constant 0 : index
      %c0_51 = arith.constant 0 : index
      %118 = vector.load %arg11[%c0_50, %c0_51] : memref<49x256xf32, #tpu.memory_space<vmem>>, vector<49x256xf32>
      tpu.vector_store %arg11[%c0_50, %c0_51], %117 {strides = array<i32>} : memref<49x256xf32, #tpu.memory_space<vmem>>, vector<49x256xf32>,
    } else {
    }
    %c0 = arith.constant 0 : index
    %c0_1 = arith.constant 0 : index
    %3 = vector.load %arg1[%c0, %c0_1] : memref<49x160xbf16, #tpu.memory_space<vmem>>, vector<49x160xbf16>
    %c0_2 = arith.constant 0 : index
    %c0_3 = arith.constant 0 : index
    %4 = vector.load %arg3[%c0_2, %c0_3] : memref<160x256xbf16, #tpu.memory_space<vmem>>, vector<160x256xbf16>
    %cst = arith.constant dense<0.000000e+00> : vector<49x256xf32>
    %5 = tpu.matmul %3, %4, %cst {dimension_numbers = #tpu.dot_dimension_numbers<[1], [0], [0], [1], [0, 0, 1, 1], [], []>} : vector<49x160xbf16>, vector<160x256xbf16>, vector<49x256xf32> -> vector<49x256xf32>
    %c0_4 = arith.constant 0 : index
    %c0_5 = arith.constant 0 : index
    %6 = vector.load %arg4[%c0_4, %c0_5] : memref<1x256xf32, #tpu.memory_space<vmem>>, vector<1x256xf32>
    %c0_6 = arith.constant 0 : index
    %c0_7 = arith.constant 0 : index
    %7 = vector.load %arg5[%c0_6, %c0_7] : memref<1x256xf32, #tpu.memory_space<vmem>>, vector<1x256xf32>
    %cst_8 = arith.constant dense<0.000000e+00> : vector<256xf32>
    %8 = vector.multi_reduction <add>, %5, %cst_8 [0] : vector<49x256xf32> to vector<256xf32>
    %9 = vector.shape_cast %8 : vector<256xf32> to vector<1x256xf32>
    %cst_9 = arith.constant 0.0204081628 : f32
    %10 = vector.broadcast %cst_9 : f32 to vector<1x256xf32>
    %11 = arith.mulf %9, %10 : vector<1x256xf32>
    %12 = arith.mulf %5, %5 : vector<49x256xf32>
    %cst_10 = arith.constant dense<0.000000e+00> : vector<256xf32>
    %13 = vector.multi_reduction <add>, %12, %cst_10 [0] : vector<49x256xf32> to vector<256xf32>
    %14 = vector.shape_cast %13 : vector<256xf32> to vector<1x256xf32>
    %cst_11 = arith.constant 0.0204081628 : f32
    %15 = vector.broadcast %cst_11 : f32 to vector<1x256xf32>
    %16 = arith.mulf %14, %15 : vector<1x256xf32>
    %17 = arith.mulf %11, %11 : vector<1x256xf32>
    %18 = arith.subf %16, %17 : vector<1x256xf32>
    %cst_12 = arith.constant 9.99999974E-6 : f32
    %19 = vector.broadcast %cst_12 : f32 to vector<1x256xf32>
    %20 = arith.addf %18, %19 : vector<1x256xf32>
    %21 = math.rsqrt %20 : vector<1x256xf32>
    %22 = arith.mulf %6, %21 : vector<1x256xf32>
    %23 = arith.mulf %11, %22 : vector<1x256xf32>
    %24 = arith.subf %7, %23 : vector<1x256xf32>
    %25 = vector.broadcast %22 : vector<1x256xf32> to vector<49x256xf32>
    %26 = arith.mulf %5, %25 : vector<49x256xf32>
    %27 = vector.broadcast %24 : vector<1x256xf32> to vector<49x256xf32>
    %28 = arith.addf %26, %27 : vector<49x256xf32>
    %cst_13 = arith.constant 0.000000e+00 : f32
    %cst_14 = arith.constant 6.000000e+00 : f32
    %29 = vector.broadcast %cst_13 : f32 to vector<49x256xf32>
    %30 = arith.maximumf %29, %28 : vector<49x256xf32>
    %31 = vector.broadcast %cst_14 : f32 to vector<49x256xf32>
    %32 = arith.minimumf %31, %30 : vector<49x256xf32>
    %c0_15 = arith.constant 0 : index
    %c0_16 = arith.constant 0 : index
    %c0_17 = arith.constant 0 : index
    %33 = vector.load %arg2[%c0_15, %c0_16, %c0_17] : memref<4x49x49xf32, #tpu.memory_space<vmem>>, vector<1x49x49xf32>
    %34 = vector.shape_cast %33 : vector<1x49x49xf32> to vector<49x49xf32>
    %c1 = arith.constant 1 : index
    %c0_18 = arith.constant 0 : index
    %c0_19 = arith.constant 0 : index
    %35 = vector.load %arg2[%c1, %c0_18, %c0_19] : memref<4x49x49xf32, #tpu.memory_space<vmem>>, vector<1x49x49xf32>
    %36 = vector.shape_cast %35 : vector<1x49x49xf32> to vector<49x49xf32>
    %c2 = arith.constant 2 : index
    %c0_20 = arith.constant 0 : index
    %c0_21 = arith.constant 0 : index
    %37 = vector.load %arg2[%c2, %c0_20, %c0_21] : memref<4x49x49xf32, #tpu.memory_space<vmem>>, vector<1x49x49xf32>
    %38 = vector.shape_cast %37 : vector<1x49x49xf32> to vector<49x49xf32>
    %c3 = arith.constant 3 : index
    %c0_22 = arith.constant 0 : index
    %c0_23 = arith.constant 0 : index
    %39 = vector.load %arg2[%c3, %c0_22, %c0_23] : memref<4x49x49xf32, #tpu.memory_space<vmem>>, vector<1x49x49xf32>
    %40 = vector.shape_cast %39 : vector<1x49x49xf32> to vector<49x49xf32>
    %cst_24 = arith.constant dense<0.000000e+00> : vector<49x256xf32>
    %41 = tpu.matmul %34, %32, %cst_24 {dimension_numbers = #tpu.dot_dimension_numbers<[1], [0], [0], [1], [0, 0, 1, 1], [], []>} : vector<49x49xf32>, vector<49x256xf32>, vector<49x256xf32> -> vector<49x256xf32>
    %cst_25 = arith.constant dense<0.000000e+00> : vector<49x256xf32>
    %42 = tpu.matmul %36, %32, %cst_25 {dimension_numbers = #tpu.dot_dimension_numbers<[1], [0], [0], [1], [0, 0, 1, 1], [], []>} : vector<49x49xf32>, vector<49x256xf32>, vector<49x256xf32> -> vector<49x256xf32>
    %c0_26 = arith.constant 0 : index
    %c0_27 = arith.constant 0 : index
    %43 = vector.load %arg6[%c0_26, %c0_27] : memref<9x256xf32, #tpu.memory_space<vmem>>, vector<9x256xf32>
    %44 = vector.extract_strided_slice %43 {offsets = [3, 0], sizes = [1, 256], strides = [1, 1]} : vector<9x256xf32> to vector<1x256xf32>
    %45 = vector.broadcast %44 : vector<1x256xf32> to vector<49x256xf32>
    %46 = arith.mulf %41, %45 : vector<49x256xf32>
    %47 = vector.extract_strided_slice %43 {offsets = [4, 0], sizes = [1, 256], strides = [1, 1]} : vector<9x256xf32> to vector<1x256xf32>
    %48 = vector.broadcast %47 : vector<1x256xf32> to vector<49x256xf32>
    %49 = arith.mulf %32, %48 : vector<49x256xf32>
    %50 = arith.addf %46, %49 : vector<49x256xf32>
    %51 = vector.extract_strided_slice %43 {offsets = [5, 0], sizes = [1, 256], strides = [1, 1]} : vector<9x256xf32> to vector<1x256xf32>
    %52 = vector.broadcast %51 : vector<1x256xf32> to vector<49x256xf32>
    %53 = arith.mulf %42, %52 : vector<49x256xf32>
    %54 = arith.addf %50, %53 : vector<49x256xf32>
    %55 = vector.extract_strided_slice %43 {offsets = [0, 0], sizes = [1, 256], strides = [1, 1]} : vector<9x256xf32> to vector<1x256xf32>
    %56 = vector.broadcast %55 : vector<1x256xf32> to vector<49x256xf32>
    %57 = arith.mulf %41, %56 : vector<49x256xf32>
    %58 = vector.extract_strided_slice %43 {offsets = [1, 0], sizes = [1, 256], strides = [1, 1]} : vector<9x256xf32> to vector<1x256xf32>
    %59 = vector.broadcast %58 : vector<1x256xf32> to vector<49x256xf32>
    %60 = arith.mulf %32, %59 : vector<49x256xf32>
    %61 = arith.addf %57, %60 : vector<49x256xf32>
    %62 = vector.extract_strided_slice %43 {offsets = [2, 0], sizes = [1, 256], strides = [1, 1]} : vector<9x256xf32> to vector<1x256xf32>
    %63 = vector.broadcast %62 : vector<1x256xf32> to vector<49x256xf32>
    %64 = arith.mulf %42, %63 : vector<49x256xf32>
    %65 = arith.addf %61, %64 : vector<49x256xf32>
    %cst_28 = arith.constant dense<0.000000e+00> : vector<49x256xf32>
    %66 = tpu.matmul %38, %65, %cst_28 {dimension_numbers = #tpu.dot_dimension_numbers<[1], [0], [0], [1], [0, 0, 1, 1], [], []>} : vector<49x49xf32>, vector<49x256xf32>, vector<49x256xf32> -> vector<49x256xf32>
    %67 = arith.addf %54, %66 : vector<49x256xf32>
    %68 = vector.extract_strided_slice %43 {offsets = [6, 0], sizes = [1, 256], strides = [1, 1]} : vector<9x256xf32> to vector<1x256xf32>
    %69 = vector.broadcast %68 : vector<1x256xf32> to vector<49x256xf32>
    %70 = arith.mulf %41, %69 : vector<49x256xf32>
    %71 = vector.extract_strided_slice %43 {offsets = [7, 0], sizes = [1, 256], strides = [1, 1]} : vector<9x256xf32> to vector<1x256xf32>
    %72 = vector.broadcast %71 : vector<1x256xf32> to vector<49x256xf32>
    %73 = arith.mulf %32, %72 : vector<49x256xf32>
    %74 = arith.addf %70, %73 : vector<49x256xf32>
    %75 = vector.extract_strided_slice %43 {offsets = [8, 0], sizes = [1, 256], strides = [1, 1]} : vector<9x256xf32> to vector<1x256xf32>
    %76 = vector.broadcast %75 : vector<1x256xf32> to vector<49x256xf32>
    %77 = arith.mulf %42, %76 : vector<49x256xf32>
    %78 = arith.addf %74, %77 : vector<49x256xf32>
    %cst_29 = arith.constant dense<0.000000e+00> : vector<49x256xf32>
    %79 = tpu.matmul %40, %78, %cst_29 {dimension_numbers = #tpu.dot_dimension_numbers<[1], [0], [0], [1], [0, 0, 1, 1], [], []>} : vector<49x49xf32>, vector<49x256xf32>, vector<49x256xf32> -> vector<49x256xf32>
    %80 = arith.addf %67, %79 : vector<49x256xf32>
    %c0_30 = arith.constant 0 : index
    %c0_31 = arith.constant 0 : index
    %81 = vector.load %arg7[%c0_30, %c0_31] : memref<1x256xf32, #tpu.memory_space<vmem>>, vector<1x256xf32>
    %c0_32 = arith.constant 0 : index
    %c0_33 = arith.constant 0 : index
    %82 = vector.load %arg8[%c0_32, %c0_33] : memref<1x256xf32, #tpu.memory_space<vmem>>, vector<1x256xf32>
    %cst_34 = arith.constant dense<0.000000e+00> : vector<256xf32>
    %83 = vector.multi_reduction <add>, %80, %cst_34 [0] : vector<49x256xf32> to vector<256xf32>
    %84 = vector.shape_cast %83 : vector<256xf32> to vector<1x256xf32>
    %cst_35 = arith.constant 0.0204081628 : f32
    %85 = vector.broadcast %cst_35 : f32 to vector<1x256xf32>
    %86 = arith.mulf %84, %85 : vector<1x256xf32>
    %87 = arith.mulf %80, %80 : vector<49x256xf32>
    %cst_36 = arith.constant dense<0.000000e+00> : vector<256xf32>
    %88 = vector.multi_reduction <add>, %87, %cst_36 [0] : vector<49x256xf32> to vector<256xf32>
    %89 = vector.shape_cast %88 : vector<256xf32> to vector<1x256xf32>
    %cst_37 = arith.constant 0.0204081628 : f32
    %90 = vector.broadcast %cst_37 : f32 to vector<1x256xf32>
    %91 = arith.mulf %89, %90 : vector<1x256xf32>
    %92 = arith.mulf %86, %86 : vector<1x256xf32>
    %93 = arith.subf %91, %92 : vector<1x256xf32>
    %cst_38 = arith.constant 9.99999974E-6 : f32
    %94 = vector.broadcast %cst_38 : f32 to vector<1x256xf32>
    %95 = arith.addf %93, %94 : vector<1x256xf32>
    %96 = math.rsqrt %95 : vector<1x256xf32>
    %97 = arith.mulf %81, %96 : vector<1x256xf32>
    %98 = arith.mulf %86, %97 : vector<1x256xf32>
    %99 = arith.subf %82, %98 : vector<1x256xf32>
    %100 = vector.broadcast %97 : vector<1x256xf32> to vector<49x256xf32>
    %101 = arith.mulf %80, %100 : vector<49x256xf32>
    %102 = vector.broadcast %99 : vector<1x256xf32> to vector<49x256xf32>
    %103 = arith.addf %101, %102 : vector<49x256xf32>
    %cst_39 = arith.constant 0.000000e+00 : f32
    %cst_40 = arith.constant 6.000000e+00 : f32
    %104 = vector.broadcast %cst_39 : f32 to vector<49x256xf32>
    %105 = arith.maximumf %104, %103 : vector<49x256xf32>
    %106 = vector.broadcast %cst_40 : f32 to vector<49x256xf32>
    %107 = arith.minimumf %106, %105 : vector<49x256xf32>
    %c0_41 = arith.constant 0 : index
    %c0_42 = arith.constant 0 : index
    %108 = vector.load %arg11[%c0_41, %c0_42] : memref<49x256xf32, #tpu.memory_space<vmem>>, vector<49x256xf32>
    %109 = arith.truncf %107 : vector<49x256xf32> to vector<49x256xbf16>
    %c0_43 = arith.constant 0 : index
    %c0_44 = arith.constant 0 : index
    %110 = vector.load %arg9[%c0_43, %c0_44] : memref<256x256xbf16, #tpu.memory_space<vmem>>, vector<256x256xbf16>
    %cst_45 = arith.constant dense<0.000000e+00> : vector<49x256xf32>
    %111 = tpu.matmul %109, %110, %cst_45 {dimension_numbers = #tpu.dot_dimension_numbers<[1], [0], [0], [1], [0, 0, 1, 1], [], []>} : vector<49x256xbf16>, vector<256x256xbf16>, vector<49x256xf32> -> vector<49x256xf32>
    %112 = arith.addf %108, %111 : vector<49x256xf32>
    %c0_46 = arith.constant 0 : index
    %c0_47 = arith.constant 0 : index
    %113 = vector.load %arg11[%c0_46, %c0_47] : memref<49x256xf32, #tpu.memory_space<vmem>>, vector<49x256xf32>
    tpu.vector_store %arg11[%c0_46, %c0_47], %112 {strides = array<i32>} : memref<49x256xf32, #tpu.memory_space<vmem>>, vector<49x256xf32>,
    %c3_i32 = arith.constant 3 : i32
    %114 = arith.cmpi eq, %arg0, %c3_i32 : i32
    %115 = arith.extui %114 : i1 to i32
    %c0_i32_48 = arith.constant 0 : i32
    %116 = arith.cmpi ne, %115, %c0_i32_48 : i32
    scf.if %116 {
      %c0_49 = arith.constant 0 : index
      %c0_50 = arith.constant 0 : index
      %117 = vector.load %arg11[%c0_49, %c0_50] : memref<49x256xf32, #tpu.memory_space<vmem>>, vector<49x256xf32>
      %c0_51 = arith.constant 0 : index
      %c0_52 = arith.constant 0 : index
      %118 = vector.load %arg10[%c0_51, %c0_52] : memref<49x256xf32, #tpu.memory_space<vmem>>, vector<49x256xf32>
      tpu.vector_store %arg10[%c0_51, %c0_52], %117 {strides = array<i32>} : memref<49x256xf32, #tpu.memory_space<vmem>>, vector<49x256xf32>,
    } else {
    }
    return
  }
  func.func @transform_0(%arg0: i32) -> (i32, i32) {
    %c0_i32 = arith.constant 0 : i32
    %c0_i32_0 = arith.constant 0 : i32
    %c0_i32_1 = arith.constant 0 : i32
    return %c0_i32, %c0_i32_0 : i32, i32
  }
  func.func @transform_1(%arg0: i32) -> (i32, i32, i32) {
    %c0_i32 = arith.constant 0 : i32
    %c0_i32_0 = arith.constant 0 : i32
    %c0_i32_1 = arith.constant 0 : i32
    %c0_i32_2 = arith.constant 0 : i32
    return %c0_i32, %c0_i32_0, %c0_i32_1 : i32, i32, i32
  }
  func.func @transform_2(%arg0: i32) -> (i32, i32) {
    %c0_i32 = arith.constant 0 : i32
    %c0_i32_0 = arith.constant 0 : i32
    return %c0_i32, %arg0 : i32, i32
  }
  func.func @transform_3(%arg0: i32) -> (i32, i32) {
    %c0_i32 = arith.constant 0 : i32
    %c0_i32_0 = arith.constant 0 : i32
    return %c0_i32, %arg0 : i32, i32
  }
  func.func @transform_4(%arg0: i32) -> (i32, i32) {
    %c0_i32 = arith.constant 0 : i32
    %c0_i32_0 = arith.constant 0 : i32
    return %c0_i32, %arg0 : i32, i32
  }
  func.func @transform_5(%arg0: i32) -> (i32, i32) {
    %c0_i32 = arith.constant 0 : i32
    %c0_i32_0 = arith.constant 0 : i32
    return %c0_i32, %arg0 : i32, i32
  }
  func.func @transform_6(%arg0: i32) -> (i32, i32) {
    %c0_i32 = arith.constant 0 : i32
    %c0_i32_0 = arith.constant 0 : i32
    return %c0_i32, %arg0 : i32, i32
  }
  func.func @transform_7(%arg0: i32) -> (i32, i32) {
    %c0_i32 = arith.constant 0 : i32
    %c0_i32_0 = arith.constant 0 : i32
    return %c0_i32, %arg0 : i32, i32
  }
  func.func @transform_8(%arg0: i32) -> (i32, i32) {
    %c0_i32 = arith.constant 0 : i32
    %c0_i32_0 = arith.constant 0 : i32
    return %arg0, %c0_i32 : i32, i32
  }
  func.func @transform_9(%arg0: i32) -> (i32, i32) {
    %c0_i32 = arith.constant 0 : i32
    %c0_i32_0 = arith.constant 0 : i32
    %c0_i32_1 = arith.constant 0 : i32
    return %c0_i32, %c0_i32_0 : i32, i32
  }
}

</mosaic_0001>

<llo_original>
// kernel: mbconv_pallas.1
$region0: #{mbconv_pallas.1}
  #allocation0 [shape = 'u32[]', space=smem, size = 0x4, offset = 0x4, fixed_abs, tag = 'smem constant byte address 0x4 - core index']
  #allocation1 [shape = 'u32[72,128]{1,0:T(1,128)}', space=vmem, size = 0x9000, scoped, tag = 'internal scratch']
  #allocation2 [shape = 'f32[49,256]{1,0:T(8,128)}', space=vmem, size = 0xe000, scoped, tag = 'scratch operand']
  %s0 = inlined_call_operand.vmem [shape: bf16[49,160], index: 0, kind: input, shape index: {}]
  %s1 = inlined_call_operand.vmem [shape: f32[4,49,49], index: 1, kind: input, shape index: {}]
  %s2 = inlined_call_operand.vmem [shape: bf16[160,1024], index: 2, kind: input, shape index: {}]
  %s3 = inlined_call_operand.vmem [shape: f32[1,1024], index: 3, kind: input, shape index: {}]
  %s4 = inlined_call_operand.vmem [shape: f32[1,1024], index: 4, kind: input, shape index: {}]
  %s5 = inlined_call_operand.hbm [shape: f32[9,1024], index: 5, kind: input, shape index: {}]
  %s6 = inlined_call_operand.vmem [shape: f32[1,1024], index: 6, kind: input, shape index: {}]
  %s7 = inlined_call_operand.vmem [shape: f32[1,1024], index: 7, kind: input, shape index: {}]
  %s8 = inlined_call_operand.hbm [shape: bf16[1024,256], index: 8, kind: input, shape index: {}]
  %s9 = inlined_call_operand.vmem [shape: f32[49,256], index: 9, kind: output, shape index: {}]
  %s10 = sld [smem:[#allocation0]]
  $region123: #{mbconv_pallas.1} parent=0
    _
  %s12 = ssub.s32 1, %s10
  %s13 = scalar_select 0, %s12, %s10
  $region1: #{mbconv_pallas.1} parent=0
    #allocation3 [shape = 'u8[163840]{0}', space=vmem, size = 0x28000, scoped, tag = 'input window, operand 2']
    #allocation4 [shape = 'u8[32768]{0}', space=vmem, size = 0x8000, scoped, tag = 'input window, operand 5']
    #allocation5 [shape = 's32[2]{0}', space=sflag, size = 0x8, scoped, tag = 'scoped memory for mbconv_pallas.1']
    #allocation6 [shape = 'u8[262144]{0}', space=vmem, size = 0x40000, scoped, tag = 'input window, operand 8']
    #allocation7 [shape = 's32[2]{0}', space=sflag, size = 0x8, scoped, tag = 'scoped memory for mbconv_pallas.1']
    %14 = vsyncpa [#allocation5], 0
    %s15 = scalar_lea.sflag [#allocation5], 1
    %16 = vsyncpa %s15, 0
    %17 = vsyncpa [#allocation7], 0
    %s18 = scalar_lea.sflag [#allocation7], 1
    %19 = vsyncpa %s18, 0
    loop: start=0, step=1, limit=6
    $region2: #{mbconv_pallas.1} parent=1 // loop_pre_header
      _
    $region3: #{mbconv_pallas.1} parent=1 // loop_header
      %s21 = sphi 0, %s25
      %p22 = scmp.ge.s32.totalorder %s21, 6
      %s29 = sphi 0, %s29
      %s31 = sphi 0, %s29
      %s32 = sphi 0, %s31
      %s46 = sphi 0, %s32
      %s50 = sphi 0, %s50
      %s52 = sphi 0, %s50
      %s53 = sphi 0, %s52
      %s67 = sphi 0, %s53
      %s73 = sphi 0, %s75
      %s76 = sphi 0, %s73
      %s77 = sphi 0, %s76
      %s93 = sphi 0, %s77
      %s99 = sphi 0, %s101
      %s102 = sphi 0, %s99
      %s103 = sphi 0, %s102
      %s119 = sphi 0, %s103
      %s125 = sphi 0, %s127
      %s128 = sphi 0, %s125
      %s129 = sphi 0, %s128
      %s145 = sphi 0, %s129
      %s151 = sphi 0, %s153
      %s154 = sphi 0, %s151
      %s155 = sphi 0, %s154
      %s171 = sphi 0, %s155
      %s177 = sphi 0, %s179
      %s180 = sphi 0, %s177
      %s181 = sphi 0, %s180
      %s197 = sphi 0, %s181
      %s203 = sphi 0, %s205
      %s206 = sphi 0, %s203
      %s207 = sphi 0, %s206
      %s223 = sphi 0, %s207
      %s229 = sphi 0, %s231
      %s232 = sphi 0, %s229
      %s233 = sphi 0, %s232
      %s249 = sphi 0, %s233
      %s253 = sphi 0, %s253
      %s255 = sphi 0, %s253
      %s256 = sphi 0, %s255
      %s270 = sphi 0, %s256
    $region4: #{mbconv_pallas.1} parent=1 // loop_header_branch
      %24 = sbr.rel (%p22) target = $region8
    $region5: #{mbconv_pallas.1} parent=1 // loop_body
      %s26 = ssub.s32 %s21, 1
      %s27 = ssub.s32 %s21, 2
      %s28 = sadd.s32 %s21, 1
      %s30 = sadd.s32 %s29, 1
      %p33 = scmp.eq.s32.totalorder %s21, 3
      %p34 = scmp.ne.s32.totalorder %s29, %s31
      %p35 = scmp.eq.s32.totalorder %s21, 0
      %p36 = por %p34, %p35
      %p37 = scmp.ne.s32.totalorder %s29, %s31
      %p38 = scmp.eq.s32.totalorder %s26, 3
      %p39 = por %p37, %p38
      %p40 = scmp.ne.s32.totalorder %s31, %s32
      %p41 = scmp.eq.s32.totalorder %s26, 0
      %p42 = por %p40, %p41
      %p43 = scmp.ne.s32.totalorder %s31, %s32
      %p44 = scmp.eq.s32.totalorder %s27, 3
      %p45 = por %p43, %p44
      %p47 = scmp.ne.s32.totalorder %s32, %s46
      %p48 = scmp.eq.s32.totalorder %s27, 0
      %p49 = por %p47, %p48
      %s51 = sadd.s32 %s50, 1
      %p54 = scmp.eq.s32.totalorder %s21, 3
      %p55 = scmp.ne.s32.totalorder %s50, %s52
      %p56 = scmp.eq.s32.totalorder %s21, 0
      %p57 = por %p55, %p56
      %p58 = scmp.ne.s32.totalorder %s50, %s52
      %p59 = scmp.eq.s32.totalorder %s26, 3
      %p60 = por %p58, %p59
      %p61 = scmp.ne.s32.totalorder %s52, %s53
      %p62 = scmp.eq.s32.totalorder %s26, 0
      %p63 = por %p61, %p62
      %p64 = scmp.ne.s32.totalorder %s52, %s53
      %p65 = scmp.eq.s32.totalorder %s27, 3
      %p66 = por %p64, %p65
      %p68 = scmp.ne.s32.totalorder %s53, %s67
      %p69 = scmp.eq.s32.totalorder %s27, 0
      %p70 = por %p68, %p69
      %s71 = ssub.s32 %s21, %s28
      %p72 = scmp.eq.s32.totalorder %s71, 0
      %s74 = sadd.s32 %s73, 1
      %s75 = scalar_select %p72, %s73, %s74
      %p78 = pneg %p72
      %p79 = scmp.eq.s32.totalorder %s21, 3
      %p80 = por %p78, %p79
      %p81 = scmp.ne.s32.totalorder %s73, %s76
      %p82 = scmp.eq.s32.totalorder %s21, 0
      %p83 = por %p81, %p82
      %p84 = scmp.ne.s32.totalorder %s73, %s76
      %p85 = scmp.eq.s32.totalorder %s26, 3
      %p86 = por %p84, %p85
      %p87 = scmp.ne.s32.totalorder %s76, %s77
      %p88 = scmp.eq.s32.totalorder %s26, 0
      %p89 = por %p87, %p88
      %p90 = scmp.ne.s32.totalorder %s76, %s77
      %p91 = scmp.eq.s32.totalorder %s27, 3
      %p92 = por %p90, %p91
      %p94 = scmp.ne.s32.totalorder %s77, %s93
      %p95 = scmp.eq.s32.totalorder %s27, 0
      %p96 = por %p94, %p95
      %s97 = ssub.s32 %s21, %s28
      %p98 = scmp.eq.s32.totalorder %s97, 0
      %s100 = sadd.s32 %s99, 1
      %s101 = scalar_select %p98, %s99, %s100
      %p104 = pneg %p98
      %p105 = scmp.eq.s32.totalorder %s21, 3
      %p106 = por %p104, %p105
      %p107 = scmp.ne.s32.totalorder %s99, %s102
      %p108 = scmp.eq.s32.totalorder %s21, 0
      %p109 = por %p107, %p108
      %p110 = scmp.ne.s32.totalorder %s99, %s102
      %p111 = scmp.eq.s32.totalorder %s26, 3
      %p112 = por %p110, %p111
      %p113 = scmp.ne.s32.totalorder %s102, %s103
      %p114 = scmp.eq.s32.totalorder %s26, 0
      %p115 = por %p113, %p114
      %p116 = scmp.ne.s32.totalorder %s102, %s103
      %p117 = scmp.eq.s32.totalorder %s27, 3
      %p118 = por %p116, %p117
      %p120 = scmp.ne.s32.totalorder %s103, %s119
      %p121 = scmp.eq.s32.totalorder %s27, 0
      %p122 = por %p120, %p121
      %s123 = ssub.s32 %s21, %s28
      %p124 = scmp.eq.s32.totalorder %s123, 0
      %s126 = sadd.s32 %s125, 1
      %s127 = scalar_select %p124, %s125, %s126
      %p130 = pneg %p124
      %p131 = scmp.eq.s32.totalorder %s21, 3
      %p132 = por %p130, %p131
      %p133 = scmp.ne.s32.totalorder %s125, %s128
      %p134 = scmp.eq.s32.totalorder %s21, 0
      %p135 = por %p133, %p134
      %p136 = scmp.ne.s32.totalorder %s125, %s128
      %p137 = scmp.eq.s32.totalorder %s26, 3
      %p138 = por %p136, %p137
      %p139 = scmp.ne.s32.totalorder %s128, %s129
      %p140 = scmp.eq.s32.totalorder %s26, 0
      %p141 = por %p139, %p140
      %p142 = scmp.ne.s32.totalorder %s128, %s129
      %p143 = scmp.eq.s32.totalorder %s27, 3
      %p144 = por %p142, %p143
      %p146 = scmp.ne.s32.totalorder %s129, %s145
      %p147 = scmp.eq.s32.totalorder %s27, 0
      %p148 = por %p146, %p147
      %s149 = ssub.s32 %s21, %s28
      %p150 = scmp.eq.s32.totalorder %s149, 0
      %s152 = sadd.s32 %s151, 1
      %s153 = scalar_select %p150, %s151, %s152
      %p156 = pneg %p150
      %p157 = scmp.eq.s32.totalorder %s21, 3
      %p158 = por %p156, %p157
      %p159 = scmp.ne.s32.totalorder %s151, %s154
      %p160 = scmp.eq.s32.totalorder %s21, 0
      %p161 = por %p159, %p160
      %p162 = scmp.ne.s32.totalorder %s151, %s154
      %p163 = scmp.eq.s32.totalorder %s26, 3
      %p164 = por %p162, %p163
      %p165 = scmp.ne.s32.totalorder %s154, %s155
      %p166 = scmp.eq.s32.totalorder %s26, 0
      %p167 = por %p165, %p166
      %p168 = scmp.ne.s32.totalorder %s154, %s155
      %p169 = scmp.eq.s32.totalorder %s27, 3
      %p170 = por %p168, %p169
      %p172 = scmp.ne.s32.totalorder %s155, %s171
      %p173 = scmp.eq.s32.totalorder %s27, 0
      %p174 = por %p172, %p173
      %s175 = ssub.s32 %s21, %s28
      %p176 = scmp.eq.s32.totalorder %s175, 0
      %s178 = sadd.s32 %s177, 1
      %s179 = scalar_select %p176, %s177, %s178
      %p182 = pneg %p176
      %p183 = scmp.eq.s32.totalorder %s21, 3
      %p184 = por %p182, %p183
      %p185 = scmp.ne.s32.totalorder %s177, %s180
      %p186 = scmp.eq.s32.totalorder %s21, 0
      %p187 = por %p185, %p186
      %p188 = scmp.ne.s32.totalorder %s177, %s180
      %p189 = scmp.eq.s32.totalorder %s26, 3
      %p190 = por %p188, %p189
      %p191 = scmp.ne.s32.totalorder %s180, %s181
      %p192 = scmp.eq.s32.totalorder %s26, 0
      %p193 = por %p191, %p192
      %p194 = scmp.ne.s32.totalorder %s180, %s181
      %p195 = scmp.eq.s32.totalorder %s27, 3
      %p196 = por %p194, %p195
      %p198 = scmp.ne.s32.totalorder %s181, %s197
      %p199 = scmp.eq.s32.totalorder %s27, 0
      %p200 = por %p198, %p199
      %s201 = ssub.s32 %s21, %s28
      %p202 = scmp.eq.s32.totalorder %s201, 0
      %s204 = sadd.s32 %s203, 1
      %s205 = scalar_select %p202, %s203, %s204
      %p208 = pneg %p202
      %p209 = scmp.eq.s32.totalorder %s21, 3
      %p210 = por %p208, %p209
      %p211 = scmp.ne.s32.totalorder %s203, %s206
      %p212 = scmp.eq.s32.totalorder %s21, 0
      %p213 = por %p211, %p212
      %p214 = scmp.ne.s32.totalorder %s203, %s206
      %p215 = scmp.eq.s32.totalorder %s26, 3
      %p216 = por %p214, %p215
      %p217 = scmp.ne.s32.totalorder %s206, %s207
      %p218 = scmp.eq.s32.totalorder %s26, 0
      %p219 = por %p217, %p218
      %p220 = scmp.ne.s32.totalorder %s206, %s207
      %p221 = scmp.eq.s32.totalorder %s27, 3
      %p222 = por %p220, %p221
      %p224 = scmp.ne.s32.totalorder %s207, %s223
      %p225 = scmp.eq.s32.totalorder %s27, 0
      %p226 = por %p224, %p225
      %s227 = ssub.s32 %s21, %s28
      %p228 = scmp.eq.s32.totalorder %s227, 0
      %s230 = sadd.s32 %s229, 1
      %s231 = scalar_select %p228, %s229, %s230
      %p234 = pneg %p228
      %p235 = scmp.eq.s32.totalorder %s21, 3
      %p236 = por %p234, %p235
      %p237 = scmp.ne.s32.totalorder %s229, %s232
      %p238 = scmp.eq.s32.totalorder %s21, 0
      %p239 = por %p237, %p238
      %p240 = scmp.ne.s32.totalorder %s229, %s232
      %p241 = scmp.eq.s32.totalorder %s26, 3
      %p242 = por %p240, %p241
      %p243 = scmp.ne.s32.totalorder %s232, %s233
      %p244 = scmp.eq.s32.totalorder %s26, 0
      %p245 = por %p243, %p244
      %p246 = scmp.ne.s32.totalorder %s232, %s233
      %p247 = scmp.eq.s32.totalorder %s27, 3
      %p248 = por %p246, %p247
      %p250 = scmp.ne.s32.totalorder %s233, %s249
      %p251 = scmp.eq.s32.totalorder %s27, 0
      %p252 = por %p250, %p251
      %s254 = sadd.s32 %s253, 1
      %p257 = scmp.eq.s32.totalorder %s21, 3
      %p258 = scmp.ne.s32.totalorder %s253, %s255
      %p259 = scmp.eq.s32.totalorder %s21, 0
      %p260 = por %p258, %p259
      %p261 = scmp.ne.s32.totalorder %s253, %s255
      %p262 = scmp.eq.s32.totalorder %s26, 3
      %p263 = por %p261, %p262
      %p264 = scmp.ne.s32.totalorder %s255, %s256
      %p265 = scmp.eq.s32.totalorder %s26, 0
      %p266 = por %p264, %p265
      %p267 = scmp.ne.s32.totalorder %s255, %s256
      %p268 = scmp.eq.s32.totalorder %s27, 3
      %p269 = por %p267, %p268
      %p271 = scmp.ne.s32.totalorder %s256, %s270
      %p272 = scmp.eq.s32.totalorder %s27, 0
      %p273 = por %p271, %p272
      %p274 = scmp.le.s32.totalorder 1, %s21
      %p275 = scmp.lt.s32.totalorder %s21, 5
      %p276 = pnand %p274, %p275
      %p277 = pneg %p276
      // Predicated region
      $region9: #{mbconv_pallas.1} parent=5 // pred_check
        _
      $region10: #{mbconv_pallas.1} parent=5 // pred_check_branch
        %279 = sbr.rel (%p276) target = $region12
      $region11: #{mbconv_pallas.1} parent=5 // pred_region
        %s280 = ssub.s32 %s21, 1
        // Predicated region
        $region13: #{mbconv_pallas.1} parent=11 // pred_check
          %p281 = pneg %p42
        $region14: #{mbconv_pallas.1} parent=11 // pred_check_branch
          %283 = sbr.rel (%p281) target = $region16
        $region15: #{mbconv_pallas.1} parent=11 // pred_region
          _
        $region16: #{mbconv_pallas.1} parent=11 // pred_fallthru
          _
        // Predicated region
        $region17: #{mbconv_pallas.1} parent=11 // pred_check
          %p284 = pneg %p63
        $region18: #{mbconv_pallas.1} parent=11 // pred_check_branch
          %286 = sbr.rel (%p284) target = $region20
        $region19: #{mbconv_pallas.1} parent=11 // pred_region
          _
        $region20: #{mbconv_pallas.1} parent=11 // pred_fallthru
          _
      $region12: #{mbconv_pallas.1} parent=5 // pred_fallthru
        _
      %p287 = scmp.lt.s32.totalorder %s21, 4
      // Predicated region
      $region21: #{mbconv_pallas.1} parent=5 // pred_check
        %p288 = pneg %p287
      $region22: #{mbconv_pallas.1} parent=5 // pred_check_branch
        %290 = sbr.rel (%p288) target = $region24
      $region23: #{mbconv_pallas.1} parent=5 // pred_region
        // Predicated region
        $region25: #{mbconv_pallas.1} parent=23 // pred_check
          %p291 = pneg %p83
        $region26: #{mbconv_pallas.1} parent=23 // pred_check_branch
          %293 = sbr.rel (%p291) target = $region28
        $region27: #{mbconv_pallas.1} parent=23 // pred_region
          %s294 = sand.u32 %s73, 1
          %s295 = sand.u32 %s73, 1
          %s296 = smul.addr %s295, 160
          %s297 = scalar_lea.vmem [#allocation3], %s296
          %s298 = smul.u32 2, %s21
          %s299 = smul.addr %s298, 4
          %s300 = scalar_lea.vmem %s2, %s299
          // Predicated region
          $region29: #{mbconv_pallas.1} parent=27 // pred_check
            _
          $region30: #{mbconv_pallas.1} parent=27 // pred_check_branch
            %302 = sbr.rel (0) target = $region32
          $region31: #{mbconv_pallas.1} parent=27 // pred_region
            // Predicated region
            $region33: #{mbconv_pallas.1} parent=31 // pred_check
              _
            $region34: #{mbconv_pallas.1} parent=31 // pred_check_branch
              %304 = sbr.rel (0) target = $region36
            $region35: #{mbconv_pallas.1} parent=31 // pred_region
              // Predicated region
              $region48: #{mbconv_pallas.1} parent=35 // pred_check
                _
              $region49: #{mbconv_pallas.1} parent=35 // pred_check_branch
                %358 = sbr.rel (0) target = $region51
              $region50: #{mbconv_pallas.1} parent=35 // pred_region
                loop: start=0, step=1, limit=1
                $region52: #{mbconv_pallas.1} parent=50 // loop_pre_header
                  _
                $region53: #{mbconv_pallas.1} parent=50 // loop_header
                  %s360 = sphi 0, %s364
                  %p361 = scmp.ge.s32.totalorder %s360, 1
                  %s365 = sphi %s300, %s300
                  %s366 = sphi %s297, %s297
                $region54: #{mbconv_pallas.1} parent=50 // loop_header_branch
                  %363 = sbr.rel (%p361) target = $region58
                $region55: #{mbconv_pallas.1} parent=50 // loop_body
                  %v367 = vld [vmem:[%s365] sm:$0xff]
                  %368 = vst [vmem:[%s366] sm:$0xff] %v367
                  %v369 = vld [vmem:[%s365 + $0x20] sm:$0xff]
                  %370 = vst [vmem:[%s366 + $0x8] sm:$0xff] %v369
                  %v371 = vld [vmem:[%s365 + $0x40] sm:$0xff]
                  %372 = vst [vmem:[%s366 + $0x10] sm:$0xff] %v371
                  %v373 = vld [vmem:[%s365 + $0x60] sm:$0xff]
                  %374 = vst [vmem:[%s366 + $0x18] sm:$0xff] %v373
                  %v375 = vld [vmem:[%s365 + $0x80] sm:$0xff]
                  %376 = vst [vmem:[%s366 + $0x20] sm:$0xff] %v375
                  %v377 = vld [vmem:[%s365 + $0xa0] sm:$0xff]
                  %378 = vst [vmem:[%s366 + $0x28] sm:$0xff] %v377
                  %v379 = vld [vmem:[%s365 + $0xc0] sm:$0xff]
                  %380 = vst [vmem:[%s366 + $0x30] sm:$0xff] %v379
                  %v381 = vld [vmem:[%s365 + $0xe0] sm:$0xff]
                  %382 = vst [vmem:[%s366 + $0x38] sm:$0xff] %v381
                  %v383 = vld [vmem:[%s365 + $0x100] sm:$0xff]
                  %384 = vst [vmem:[%s366 + $0x40] sm:$0xff] %v383
                  %v385 = vld [vmem:[%s365 + $0x120] sm:$0xff]
                  %386 = vst [vmem:[%s366 + $0x48] sm:$0xff] %v385
                  %v387 = vld [vmem:[%s365 + $0x140] sm:$0xff]
                  %388 = vst [vmem:[%s366 + $0x50] sm:$0xff] %v387
                  %v389 = vld [vmem:[%s365 + $0x160] sm:$0xff]
                  %390 = vst [vmem:[%s366 + $0x58] sm:$0xff] %v389
                  %v391 = vld [vmem:[%s365 + $0x180] sm:$0xff]
                  %392 = vst [vmem:[%s366 + $0x60] sm:$0xff] %v391
                  %v393 = vld [vmem:[%s365 + $0x1a0] sm:$0xff]
                  %394 = vst [vmem:[%s366 + $0x68] sm:$0xff] %v393
                  %v395 = vld [vmem:[%s365 + $0x1c0] sm:$0xff]
                  %396 = vst [vmem:[%s366 + $0x70] sm:$0xff] %v395
                  %v397 = vld [vmem:[%s365 + $0x1e0] sm:$0xff]
                  %398 = vst [vmem:[%s366 + $0x78] sm:$0xff] %v397
                  %v399 = vld [vmem:[%s365 + $0x200] sm:$0xff]
                  %400 = vst [vmem:[%s366 + $0x80] sm:$0xff] %v399
                  %v401 = vld [vmem:[%s365 + $0x220] sm:$0xff]
                  %402 = vst [vmem:[%s366 + $0x88] sm:$0xff] %v401
                  %v403 = vld [vmem:[%s365 + $0x240] sm:$0xff]
                  %404 = vst [vmem:[%s366 + $0x90] sm:$0xff] %v403
                  %v405 = vld [vmem:[%s365 + $0x260] sm:$0xff]
                  %406 = vst [vmem:[%s366 + $0x98] sm:$0xff] %v405
                $region56: #{mbconv_pallas.1} parent=50 // loop_footer
                  %s364 = sadd.s32 1, %s360
                $region57: #{mbconv_pallas.1} parent=50 // loop_footer_branch
                  %359 = sbr.rel target = $region53
                $region58: #{mbconv_pallas.1} parent=50 // loop_exit
                  _
              $region51: #{mbconv_pallas.1} parent=35 // pred_fallthru
                _
              // Predicated region
              $region59: #{mbconv_pallas.1} parent=35 // pred_check
                _
              $region60: #{mbconv_pallas.1} parent=35 // pred_check_branch
                %408 = sbr.rel target = $region62
              $region61: #{mbconv_pallas.1} parent=35 // pred_region
                _
              $region62: #{mbconv_pallas.1} parent=35 // pred_fallthru
                _
            $region36: #{mbconv_pallas.1} parent=31 // pred_fallthru
              _
            // Predicated region
            $region37: #{mbconv_pallas.1} parent=31 // pred_check
              _
            $region38: #{mbconv_pallas.1} parent=31 // pred_check_branch
              %306 = sbr.rel target = $region40
            $region39: #{mbconv_pallas.1} parent=31 // pred_region
              %s308 = ssub.s32 256, 1
              loop: start=0, step=1, limit=1
              $region41: #{mbconv_pallas.1} parent=39 // loop_pre_header
                _
              $region42: #{mbconv_pallas.1} parent=39 // loop_header
                %s310 = sphi 0, %s314
                %p311 = scmp.ge.s32.totalorder %s310, 1
                %s315 = sphi %s300, %s300
                %s316 = sphi %s297, %s297
              $region43: #{mbconv_pallas.1} parent=39 // loop_header_branch
                %313 = sbr.rel (%p311) target = $region47
              $region44: #{mbconv_pallas.1} parent=39 // loop_body
                %v317 = vld [vmem:[%s315] sm:%s308]
                %318 = vst [vmem:[%s316] sm:%s308] %v317
                %v319 = vld [vmem:[%s315 + $0x20] sm:%s308]
                %320 = vst [vmem:[%s316 + $0x8] sm:%s308] %v319
                %v321 = vld [vmem:[%s315 + $0x40] sm:%s308]
                %322 = vst [vmem:[%s316 + $0x10] sm:%s308] %v321
                %v323 = vld [vmem:[%s315 + $0x60] sm:%s308]
                %324 = vst [vmem:[%s316 + $0x18] sm:%s308] %v323
                %v325 = vld [vmem:[%s315 + $0x80] sm:%s308]
                %326 = vst [vmem:[%s316 + $0x20] sm:%s308] %v325
                %v327 = vld [vmem:[%s315 + $0xa0] sm:%s308]
                %328 = vst [vmem:[%s316 + $0x28] sm:%s308] %v327
                %v329 = vld [vmem:[%s315 + $0xc0] sm:%s308]
                %330 = vst [vmem:[%s316 + $0x30] sm:%s308] %v329
                %v331 = vld [vmem:[%s315 + $0xe0] sm:%s308]
                %332 = vst [vmem:[%s316 + $0x38] sm:%s308] %v331
                %v333 = vld [vmem:[%s315 + $0x100] sm:%s308]
                %334 = vst [vmem:[%s316 + $0x40] sm:%s308] %v333
                %v335 = vld [vmem:[%s315 + $0x120] sm:%s308]
                %336 = vst [vmem:[%s316 + $0x48] sm:%s308] %v335
                %v337 = vld [vmem:[%s315 + $0x140] sm:%s308]
                %338 = vst [vmem:[%s316 + $0x50] sm:%s308] %v337
                %v339 = vld [vmem:[%s315 + $0x160] sm:%s308]
                %340 = vst [vmem:[%s316 + $0x58] sm:%s308] %v339
                %v341 = vld [vmem:[%s315 + $0x180] sm:%s308]
                %342 = vst [vmem:[%s316 + $0x60] sm:%s308] %v341
                %v343 = vld [vmem:[%s315 + $0x1a0] sm:%s308]
                %344 = vst [vmem:[%s316 + $0x68] sm:%s308] %v343
                %v345 = vld [vmem:[%s315 + $0x1c0] sm:%s308]
                %346 = vst [vmem:[%s316 + $0x70] sm:%s308] %v345
                %v347 = vld [vmem:[%s315 + $0x1e0] sm:%s308]
                %348 = vst [vmem:[%s316 + $0x78] sm:%s308] %v347
                %v349 = vld [vmem:[%s315 + $0x200] sm:%s308]
                %350 = vst [vmem:[%s316 + $0x80] sm:%s308] %v349
                %v351 = vld [vmem:[%s315 + $0x220] sm:%s308]
                %352 = vst [vmem:[%s316 + $0x88] sm:%s308] %v351
                %v353 = vld [vmem:[%s315 + $0x240] sm:%s308]
                %354 = vst [vmem:[%s316 + $0x90] sm:%s308] %v353
                %v355 = vld [vmem:[%s315 + $0x260] sm:%s308]
                %356 = vst [vmem:[%s316 + $0x98] sm:%s308] %v355
              $region45: #{mbconv_pallas.1} parent=39 // loop_footer
                %s314 = sadd.s32 1, %s310
              $region46: #{mbconv_pallas.1} parent=39 // loop_footer_branch
                %309 = sbr.rel target = $region42
              $region47: #{mbconv_pallas.1} parent=39 // loop_exit
                _
            $region40: #{mbconv_pallas.1} parent=31 // pred_fallthru
              _
          $region32: #{mbconv_pallas.1} parent=27 // pred_fallthru
            _
          %409 = vnop
        $region28: #{mbconv_pallas.1} parent=23 // pred_fallthru
          _
        // Predicated region
        $region63: #{mbconv_pallas.1} parent=23 // pred_check
          %p410 = pneg %p109
        $region64: #{mbconv_pallas.1} parent=23 // pred_check_branch
          %412 = sbr.rel (%p410) target = $region66
        $region65: #{mbconv_pallas.1} parent=23 // pred_region
          %s413 = smul.u32 2, %s21
          %p414 = scmp.lt.s32.totalorder %s413, 7
          %s415 = scalar_select %p414, %s413, 7
          %s416 = scalar_lea.vmem %s3, %s415
          %s417 = smul.u32 2, %s21
        $region66: #{mbconv_pallas.1} parent=23 // pred_fallthru
          _
        // Predicated region
        $region67: #{mbconv_pallas.1} parent=23 // pred_check
          %p418 = pneg %p135
        $region68: #{mbconv_pallas.1} parent=23 // pred_check_branch
          %420 = sbr.rel (%p418) target = $region70
        $region69: #{mbconv_pallas.1} parent=23 // pred_region
          %s421 = smul.u32 2, %s21
          %p422 = scmp.lt.s32.totalorder %s421, 7
          %s423 = scalar_select %p422, %s421, 7
          %s424 = scalar_lea.vmem %s4, %s423
          %s425 = smul.u32 2, %s21
        $region70: #{mbconv_pallas.1} parent=23 // pred_fallthru
          _
        // Predicated region
        $region71: #{mbconv_pallas.1} parent=23 // pred_check
          %p426 = pneg %p161
        $region72: #{mbconv_pallas.1} parent=23 // pred_check_branch
          %428 = sbr.rel (%p426) target = $region74
        $region73: #{mbconv_pallas.1} parent=23 // pred_region
          %s429 = sand.u32 %s151, 1
          %s430 = scalar_lea.sflag [#allocation5], %s429
          %s431 = sand.u32 %s151, 1
          %s432 = smul.addr %s431, 32
          %s433 = scalar_lea.vmem [#allocation4], %s432
          %s434 = smul.u32 2, %s21
          %436 = vsyncadd %s430, 0
          %s437 = smul.addr %s434, 8
          %s438 = scalar_lea.hbm %s5, %s437
          %s439 = sshll.u32 %s438, 4
          %s440 = int_to_ptr.hbm [resolvable:$true] %s439
          %s441 = sshll.u32 %s433, 4
          %s442 = int_to_ptr.vmem [resolvable:$true] %s441
          %447 = dma.hbm_to_vmem [thread:$0]  %s440, 512, %s442, %s430, 1024, 256, 16
        $region74: #{mbconv_pallas.1} parent=23 // pred_fallthru
          _
        // Predicated region
        $region75: #{mbconv_pallas.1} parent=23 // pred_check
          %p448 = pneg %p187
        $region76: #{mbconv_pallas.1} parent=23 // pred_check_branch
          %450 = sbr.rel (%p448) target = $region78
        $region77: #{mbconv_pallas.1} parent=23 // pred_region
          %s451 = smul.u32 2, %s21
          %p452 = scmp.lt.s32.totalorder %s451, 7
          %s453 = scalar_select %p452, %s451, 7
          %s454 = scalar_lea.vmem %s6, %s453
          %s455 = smul.u32 2, %s21
        $region78: #{mbconv_pallas.1} parent=23 // pred_fallthru
          _
        // Predicated region
        $region79: #{mbconv_pallas.1} parent=23 // pred_check
          %p456 = pneg %p213
        $region80: #{mbconv_pallas.1} parent=23 // pred_check_branch
          %458 = sbr.rel (%p456) target = $region82
        $region81: #{mbconv_pallas.1} parent=23 // pred_region
          %s459 = smul.u32 2, %s21
          %p460 = scmp.lt.s32.totalorder %s459, 7
          %s461 = scalar_select %p460, %s459, 7
          %s462 = scalar_lea.vmem %s7, %s461
          %s463 = smul.u32 2, %s21
        $region82: #{mbconv_pallas.1} parent=23 // pred_fallthru
          _
        // Predicated region
        $region83: #{mbconv_pallas.1} parent=23 // pred_check
          %p464 = pneg %p239
        $region84: #{mbconv_pallas.1} parent=23 // pred_check_branch
          %466 = sbr.rel (%p464) target = $region86
        $region85: #{mbconv_pallas.1} parent=23 // pred_region
          %s467 = sand.u32 %s229, 1
          %s468 = scalar_lea.sflag [#allocation7], %s467
          %s469 = sand.u32 %s229, 1
          %s470 = smul.addr %s469, 256
          %s471 = scalar_lea.vmem [#allocation6], %s470
          %s472 = smul.u32 32, %s21
          %474 = vsyncadd %s468, 0
          %s475 = smul.addr %s472, 2
          %s476 = smul.addr %s475, 4
          %s477 = scalar_lea.hbm %s8, %s476
          %s478 = sshll.u32 %s477, 4
          %s479 = int_to_ptr.hbm [resolvable:$true] %s478
          %s480 = sshll.u32 %s471, 4
          %s481 = int_to_ptr.vmem [resolvable:$true] %s480
          %486 = dma.hbm_to_vmem [thread:$0]  %s479, 4096, %s481, %s468, 128, 128, 8
        $region86: #{mbconv_pallas.1} parent=23 // pred_fallthru
          _
      $region24: #{mbconv_pallas.1} parent=5 // pred_fallthru
        _
      %p487 = scmp.le.s32.totalorder 1, %s21
      %p488 = scmp.lt.s32.totalorder %s21, 5
      %p489 = pnand %p487, %p488
      %p490 = pneg %p489
      // Predicated region
      $region87: #{mbconv_pallas.1} parent=5 // pred_check
        _
      $region88: #{mbconv_pallas.1} parent=5 // pred_check_branch
        %492 = sbr.rel (%p489) target = $region90
      $region89: #{mbconv_pallas.1} parent=5 // pred_region
        %s493 = ssub.s32 %s21, 1
        %s494 = sand.u32 %s76, 1
        %s495 = sand.u32 %s76, 1
        %s496 = smul.addr %s495, 160
        %s497 = scalar_lea.vmem [#allocation3], %s496
        // Predicated region
        $region91: #{mbconv_pallas.1} parent=89 // pred_check
          %p498 = pneg %p89
        $region92: #{mbconv_pallas.1} parent=89 // pred_check_branch
          %500 = sbr.rel (%p498) target = $region94
        $region93: #{mbconv_pallas.1} parent=89 // pred_region
          _
        $region94: #{mbconv_pallas.1} parent=89 // pred_fallthru
          _
        %s501 = sand.u32 %s154, 1
        %s502 = scalar_lea.sflag [#allocation5], %s501
        %s503 = sand.u32 %s154, 1
        %s504 = smul.addr %s503, 32
        %s505 = scalar_lea.vmem [#allocation4], %s504
        // Predicated region
        $region95: #{mbconv_pallas.1} parent=89 // pred_check
          %p506 = pneg %p167
        $region96: #{mbconv_pallas.1} parent=89 // pred_check_branch
          %508 = sbr.rel (%p506) target = $region98
        $region97: #{mbconv_pallas.1} parent=89 // pred_region
          %510 = dma.done %s502, 512
        $region98: #{mbconv_pallas.1} parent=89 // pred_fallthru
          _
        %s511 = sand.u32 %s232, 1
        %s512 = scalar_lea.sflag [#allocation7], %s511
        %s513 = sand.u32 %s232, 1
        %s514 = smul.addr %s513, 256
        %s515 = scalar_lea.vmem [#allocation6], %s514
        // Predicated region
        $region99: #{mbconv_pallas.1} parent=89 // pred_check
          %p516 = pneg %p245
        $region100: #{mbconv_pallas.1} parent=89 // pred_check_branch
          %518 = sbr.rel (%p516) target = $region102
        $region101: #{mbconv_pallas.1} parent=89 // pred_region
          %520 = dma.done %s512, 4096
        $region102: #{mbconv_pallas.1} parent=89 // pred_fallthru
          _
        %p521 = pneg %p42
        %p522 = pneg %p39
        %p523 = pneg %p63
        %p524 = pneg %p60
        %s525 = sand.u32 %s76, 1
        %s526 = sand.u32 %s76, 1
        %s527 = smul.addr %s526, 160
        %s528 = scalar_lea.vmem [#allocation3], %s527
        %p529 = pneg %p89
        %p530 = pneg %p86
        %s531 = smul.u32 2, %s26
        %p532 = scmp.lt.s32.totalorder %s531, 7
        %s533 = scalar_select %p532, %s531, 7
        %s534 = scalar_lea.vmem %s3, %s533
        %p535 = pneg %p115
        %p536 = pneg %p112
        %s537 = smul.u32 2, %s26
        %p538 = scmp.lt.s32.totalorder %s537, 7
        %s539 = scalar_select %p538, %s537, 7
        %s540 = scalar_lea.vmem %s4, %s539
        %p541 = pneg %p141
        %p542 = pneg %p138
        %s543 = sand.u32 %s154, 1
        %s544 = scalar_lea.sflag [#allocation5], %s543
        %s545 = sand.u32 %s154, 1
        %s546 = smul.addr %s545, 32
        %s547 = scalar_lea.vmem [#allocation4], %s546
        %p548 = pneg %p167
        %p549 = pneg %p164
        %s550 = smul.u32 2, %s26
        %p551 = scmp.lt.s32.totalorder %s550, 7
        %s552 = scalar_select %p551, %s550, 7
        %s553 = scalar_lea.vmem %s6, %s552
        %p554 = pneg %p193
        %p555 = pneg %p190
        %s556 = smul.u32 2, %s26
        %p557 = scmp.lt.s32.totalorder %s556, 7
        %s558 = scalar_select %p557, %s556, 7
        %s559 = scalar_lea.vmem %s7, %s558
        %p560 = pneg %p219
        %p561 = pneg %p216
        %s562 = sand.u32 %s232, 1
        %s563 = scalar_lea.sflag [#allocation7], %s562
        %s564 = sand.u32 %s232, 1
        %s565 = smul.addr %s564, 256
        %s566 = scalar_lea.vmem [#allocation6], %s565
        %p567 = pneg %p245
        %p568 = pneg %p242
        %p569 = pneg %p266
        %p570 = pneg %p263
        %s571 = smul.u32 2, %s26
        %s572 = smul.u32 2, %s26
        %p573 = scmp.lt.s32.totalorder %s572, 7
        %s574 = scalar_select %p573, %s572, 7
        %s575 = scalar_lea.vmem %s3, %s574
        %s576 = smul.u32 2, %s26
        %s577 = smul.u32 2, %s26
        %p578 = scmp.lt.s32.totalorder %s577, 7
        %s579 = scalar_select %p578, %s577, 7
        %s580 = scalar_lea.vmem %s4, %s579
        %s581 = smul.u32 2, %s26
        %s582 = smul.u32 2, %s26
        %s583 = smul.u32 2, %s26
        %p584 = scmp.lt.s32.totalorder %s583, 7
        %s585 = scalar_select %p584, %s583, 7
        %s586 = scalar_lea.vmem %s6, %s585
        %s587 = smul.u32 2, %s26
        %s588 = smul.u32 2, %s26
        %p589 = scmp.lt.s32.totalorder %s588, 7
        %s590 = scalar_select %p589, %s588, 7
        %s591 = scalar_lea.vmem %s7, %s590
        %s592 = smul.u32 2, %s26
        %s593 = smul.u32 32, %s26
        %p595 = scmp.eq.s32.totalorder %s26, 0
        // Predicated region
        $region103: #{mbconv_pallas.1} parent=89 // pred_check
          %p596 = pneg %p595
        $region104: #{mbconv_pallas.1} parent=89 // pred_check_branch
          %598 = sbr.rel (%p596) target = $region106
        $region105: #{mbconv_pallas.1} parent=89 // pred_region
          %599 = vst [vmem:[#allocation2] sm:$0xff] 0.0
          %600 = vst [vmem:[#allocation2 + $0x8] sm:$0xff] 0.0
          %601 = vst [vmem:[#allocation2 + $0x10] sm:$0xff] 0.0
          %602 = vst [vmem:[#allocation2 + $0x18] sm:$0xff] 0.0
          %603 = vst [vmem:[#allocation2 + $0x20] sm:$0xff] 0.0
          %604 = vst [vmem:[#allocation2 + $0x28] sm:$0xff] 0.0
          %605 = vst [vmem:[#allocation2 + $0x30] sm:$0xff] 0.0
          %606 = vst [vmem:[#allocation2 + $0x38] sm:$0xff] 0.0
          %607 = vst [vmem:[#allocation2 + $0x40] sm:$0xff] 0.0
          %608 = vst [vmem:[#allocation2 + $0x48] sm:$0xff] 0.0
          %609 = vst [vmem:[#allocation2 + $0x50] sm:$0xff] 0.0
          %610 = vst [vmem:[#allocation2 + $0x58] sm:$0xff] 0.0
          %611 = vst [vmem:[#allocation2 + $0x60] sm:$0x1] 0.0
          %612 = vst [vmem:[#allocation2 + $0x68] sm:$0x1] 0.0
        $region106: #{mbconv_pallas.1} parent=89 // pred_fallthru
          _
        %v613 = vld [vmem:[%s0] sm:$0xff]
        %v614 = vld [vmem:[%s0 + $0x8] sm:$0xff]
        %v615 = vld [vmem:[%s0 + $0x10] sm:$0xff]
        %v616 = vld [vmem:[%s0 + $0x18] sm:$0xff]
        %v617 = vld [vmem:[%s0 + $0x20] sm:$0xff]
        %v618 = vld [vmem:[%s0 + $0x28] sm:$0xff]
        %v619 = vld [vmem:[%s0 + $0x30] sm:$0x11]
        %v620 = vld [vmem:[%s497] sm:$0xff]
        %v621 = vld [vmem:[%s497 + $0x8] sm:$0xff]
        %v622 = vld [vmem:[%s497 + $0x10] sm:$0xff]
        %v623 = vld [vmem:[%s497 + $0x18] sm:$0xff]
        %v624 = vld [vmem:[%s497 + $0x20] sm:$0xff]
        %v625 = vld [vmem:[%s497 + $0x28] sm:$0xff]
        %v626 = vld [vmem:[%s497 + $0x30] sm:$0xff]
        %v627 = vld [vmem:[%s497 + $0x38] sm:$0xff]
        %v628 = vld [vmem:[%s497 + $0x40] sm:$0xff]
        %v629 = vld [vmem:[%s497 + $0x48] sm:$0xff]
        %v630 = vld [vmem:[%s497 + $0x50] sm:$0xff]
        %v631 = vld [vmem:[%s497 + $0x58] sm:$0xff]
        %v632 = vld [vmem:[%s497 + $0x60] sm:$0xff]
        %v633 = vld [vmem:[%s497 + $0x68] sm:$0xff]
        %v634 = vld [vmem:[%s497 + $0x70] sm:$0xff]
        %v635 = vld [vmem:[%s497 + $0x78] sm:$0xff]
        %v636 = vld [vmem:[%s497 + $0x80] sm:$0xff]
        %v637 = vld [vmem:[%s497 + $0x88] sm:$0xff]
        %v638 = vld [vmem:[%s497 + $0x90] sm:$0xff]
        %v639 = vld [vmem:[%s497 + $0x98] sm:$0xff]
        %v647 = vunpack.c.l.b16 %v613
        %v648 = vunpack.c.h.b16 %v613
        %v649 = vunpack.c.l.b16 %v614
        %v650 = vunpack.c.h.b16 %v614
        %v651 = vunpack.c.l.b16 %v615
        %v652 = vunpack.c.h.b16 %v615
        %v653 = vunpack.c.l.b16 %v616
        %v654 = vunpack.c.h.b16 %v616
        %v655 = vunpack.c.l.b16 %v617
        %v656 = vunpack.c.h.b16 %v617
        %v657 = vunpack.c.l.b16 %v618
        %v658 = vunpack.c.h.b16 %v618
        %v659 = vunpack.c.l.b16 %v619
        %v660 = vunpack.c.h.b16 %v619
        %v661 = vpack.c.b16 %v649, %v647
        %v662 = vpack.c.b16 %v650, %v648
        %v663 = vpack.c.b16 %v653, %v651
        %v664 = vpack.c.b16 %v654, %v652
        %v665 = vpack.c.b16 %v657, %v655
        %v666 = vpack.c.b16 %v658, %v656
        %v667 = vpack.c.b16 %v659, %v659
        %v668 = vpack.c.b16 %v660, %v660
        %v693 = vunpack.c.l.b16 %v620
        %v694 = vunpack.c.h.b16 %v620
        %v695 = vunpack.c.l.b16 %v621
        %v696 = vunpack.c.h.b16 %v621
        %v697 = vunpack.c.l.b16 %v622
        %v698 = vunpack.c.h.b16 %v622
        %v699 = vunpack.c.l.b16 %v623
        %v700 = vunpack.c.h.b16 %v623
        %v701 = vunpack.c.l.b16 %v624
        %v702 = vunpack.c.h.b16 %v624
        %v703 = vunpack.c.l.b16 %v625
        %v704 = vunpack.c.h.b16 %v625
        %v705 = vunpack.c.l.b16 %v626
        %v706 = vunpack.c.h.b16 %v626
        %v707 = vunpack.c.l.b16 %v627
        %v708 = vunpack.c.h.b16 %v627
        %v709 = vunpack.c.l.b16 %v628
        %v710 = vunpack.c.h.b16 %v628
        %v711 = vunpack.c.l.b16 %v629
        %v712 = vunpack.c.h.b16 %v629
        %v713 = vunpack.c.l.b16 %v630
        %v714 = vunpack.c.h.b16 %v630
        %v715 = vunpack.c.l.b16 %v631
        %v716 = vunpack.c.h.b16 %v631
        %v717 = vunpack.c.l.b16 %v632
        %v718 = vunpack.c.h.b16 %v632
        %v719 = vunpack.c.l.b16 %v633
        %v720 = vunpack.c.h.b16 %v633
        %v721 = vunpack.c.l.b16 %v634
        %v722 = vunpack.c.h.b16 %v634
        %v723 = vunpack.c.l.b16 %v635
        %v724 = vunpack.c.h.b16 %v635
        %v725 = vunpack.c.l.b16 %v636
        %v726 = vunpack.c.h.b16 %v636
        %v727 = vunpack.c.l.b16 %v637
        %v728 = vunpack.c.h.b16 %v637
        %v729 = vunpack.c.l.b16 %v638
        %v730 = vunpack.c.h.b16 %v638
        %v731 = vunpack.c.l.b16 %v639
        %v732 = vunpack.c.h.b16 %v639
        %v733 = vpack.c.b16 %v695, %v693
        %v734 = vpack.c.b16 %v696, %v694
        %v735 = vpack.c.b16 %v699, %v697
        %v736 = vpack.c.b16 %v700, %v698
        %v737 = vpack.c.b16 %v703, %v701
        %v738 = vpack.c.b16 %v704, %v702
        %v739 = vpack.c.b16 %v707, %v705
        %v740 = vpack.c.b16 %v708, %v706
        %v741 = vpack.c.b16 %v711, %v709
        %v742 = vpack.c.b16 %v712, %v710
        %v743 = vpack.c.b16 %v715, %v713
        %v744 = vpack.c.b16 %v716, %v714
        %v745 = vpack.c.b16 %v719, %v717
        %v746 = vpack.c.b16 %v720, %v718
        %v747 = vpack.c.b16 %v723, %v721
        %v748 = vpack.c.b16 %v724, %v722
        %v749 = vpack.c.b16 %v727, %v725
        %v750 = vpack.c.b16 %v728, %v726
        %v751 = vpack.c.b16 %v731, %v729
        %v752 = vpack.c.b16 %v732, %v730
        %vm773 = vcmask 261120
        %v775 = vsel %vm773, %v662, 0
        %v778 = vsel %vm773, %v664, 0
        %v781 = vsel %vm773, %v666, 0
        %v784 = vsel %vm773, %v668, 0
        %786 = vmatpush.bf16.msra.mxu0 %v747
        %787 = vmatpush.bf16.msra.mxu0 %v745
        %788 = vmatpush.bf16.msra.mxu0 %v743
        %789 = vmatpush.bf16.msra.mxu0 %v741
        %790 = vmatpush.bf16.msra.mxu0 %v739
        %791 = vmatpush.bf16.msra.mxu0 %v737
        %792 = vmatpush.bf16.msra.mxu0 %v735
        %793 = vmatpush.bf16.msra.mxu0 %v733
        %794 = vmatmul.bf16.gmra.mxu0 %v661
        %v795 = vpop.f32.mrf.mxu0
        %v796 = vadd.f32 0.0, %v795
        %v797 = vpop.f32.mrf.mxu0
        %v798 = vadd.f32 0.0, %v797
        %799 = vmatmul.bf16.gmra.mxu0 %v663
        %v800 = vpop.f32.mrf.mxu0
        %v801 = vadd.f32 0.0, %v800
        %v802 = vpop.f32.mrf.mxu0
        %v803 = vadd.f32 0.0, %v802
        %804 = vmatmul.bf16.gmra.mxu0 %v665
        %v805 = vpop.f32.mrf.mxu0
        %v806 = vadd.f32 0.0, %v805
        %v807 = vpop.f32.mrf.mxu0
        %v808 = vadd.f32 0.0, %v807
        %809 = vmatmul.bf16.gmra.mxu0 %v667
        %v810 = vpop.f32.mrf.mxu0
        %v811 = vadd.f32 0.0, %v810
        %v812 = vpop.f32.mrf.mxu0
        %813 = vdwg.mxu0
        %814 = vmatpush.bf16.msra.mxu0 0
        %815 = vmatpush.bf16.msra.mxu0 0
        %816 = vmatpush.bf16.msra.mxu0 0
        %817 = vmatpush.bf16.msra.mxu0 0
        %818 = vmatpush.bf16.msra.mxu0 0
        %819 = vmatpush.bf16.msra.mxu0 0
        %820 = vmatpush.bf16.msra.mxu0 %v751
        %821 = vmatpush.bf16.msra.mxu0 %v749
        %822 = vmatmul.bf16.gmra.mxu0 %v775
        %v823 = vpop.f32.mrf.mxu0
        %v824 = vadd.f32 %v796, %v823
        %v825 = vpop.f32.mrf.mxu0
        %v826 = vadd.f32 %v798, %v825
        %827 = vmatmul.bf16.gmra.mxu0 %v778
        %v828 = vpop.f32.mrf.mxu0
        %v829 = vadd.f32 %v801, %v828
        %v830 = vpop.f32.mrf.mxu0
        %v831 = vadd.f32 %v803, %v830
        %832 = vmatmul.bf16.gmra.mxu0 %v781
        %v833 = vpop.f32.mrf.mxu0
        %v834 = vadd.f32 %v806, %v833
        %v835 = vpop.f32.mrf.mxu0
        %v836 = vadd.f32 %v808, %v835
        %837 = vmatmul.bf16.gmra.mxu0 %v784
        %v838 = vpop.f32.mrf.mxu0
        %v839 = vadd.f32 %v811, %v838
        %v840 = vpop.f32.mrf.mxu0
        %841 = vdwg.mxu0
        %842 = vmatpush.bf16.msra.mxu0 %v748
        %843 = vmatpush.bf16.msra.mxu0 %v746
        %844 = vmatpush.bf16.msra.mxu0 %v744
        %845 = vmatpush.bf16.msra.mxu0 %v742
        %846 = vmatpush.bf16.msra.mxu0 %v740
        %847 = vmatpush.bf16.msra.mxu0 %v738
        %848 = vmatpush.bf16.msra.mxu0 %v736
        %849 = vmatpush.bf16.msra.mxu0 %v734
        %850 = vmatmul.bf16.gmra.mxu0 %v661
        %v851 = vpop.f32.mrf.mxu0
        %v852 = vadd.f32 0.0, %v851
        %v853 = vpop.f32.mrf.mxu0
        %v854 = vadd.f32 0.0, %v853
        %855 = vmatmul.bf16.gmra.mxu0 %v663
        %v856 = vpop.f32.mrf.mxu0
        %v857 = vadd.f32 0.0, %v856
        %v858 = vpop.f32.mrf.mxu0
        %v859 = vadd.f32 0.0, %v858
        %860 = vmatmul.bf16.gmra.mxu0 %v665
        %v861 = vpop.f32.mrf.mxu0
        %v862 = vadd.f32 0.0, %v861
        %v863 = vpop.f32.mrf.mxu0
        %v864 = vadd.f32 0.0, %v863
        %865 = vmatmul.bf16.gmra.mxu0 %v667
        %v866 = vpop.f32.mrf.mxu0
        %v867 = vadd.f32 0.0, %v866
        %v868 = vpop.f32.mrf.mxu0
        %869 = vdwg.mxu0
        %870 = vmatpush.bf16.msra.mxu0 0
        %871 = vmatpush.bf16.msra.mxu0 0
        %872 = vmatpush.bf16.msra.mxu0 0
        %873 = vmatpush.bf16.msra.mxu0 0
        %874 = vmatpush.bf16.msra.mxu0 0
        %875 = vmatpush.bf16.msra.mxu0 0
        %876 = vmatpush.bf16.msra.mxu0 %v752
        %877 = vmatpush.bf16.msra.mxu0 %v750
        %878 = vmatmul.bf16.gmra.mxu0 %v775
        %v879 = vpop.f32.mrf.mxu0
        %v880 = vadd.f32 %v852, %v879
        %v881 = vpop.f32.mrf.mxu0
        %v882 = vadd.f32 %v854, %v881
        %883 = vmatmul.bf16.gmra.mxu0 %v778
        %v884 = vpop.f32.mrf.mxu0
        %v885 = vadd.f32 %v857, %v884
        %v886 = vpop.f32.mrf.mxu0
        %v887 = vadd.f32 %v859, %v886
        %888 = vmatmul.bf16.gmra.mxu0 %v781
        %v889 = vpop.f32.mrf.mxu0
        %v890 = vadd.f32 %v862, %v889
        %v891 = vpop.f32.mrf.mxu0
        %v892 = vadd.f32 %v864, %v891
        %893 = vmatmul.bf16.gmra.mxu0 %v784
        %v894 = vpop.f32.mrf.mxu0
        %v895 = vadd.f32 %v867, %v894
        %v896 = vpop.f32.mrf.mxu0
        %897 = vdwg.mxu0
        %v898 = vld [vmem:[%s575] sm:$0x3]
        %v899 = vld [vmem:[%s580] sm:$0x3]
        %v900 = vadd.f32 %v824, %v826
        %v901 = vadd.f32 %v900, %v829
        %v902 = vadd.f32 %v901, %v831
        %v903 = vadd.f32 %v902, %v834
        %v904 = vadd.f32 %v903, %v836
        %vm905 = vcmask 1040384
        %v906 = vsel %vm905, %v839, 0.0
        %v907 = vadd.f32 %v904, %v906
        %v908 = vrot.slane %v907, 4
        %v909 = vadd.f32 %v907, %v908
        %v910 = vrot.slane %v909, 2
        %v911 = vadd.f32 %v909, %v910
        %v912 = vrot.slane %v911, 1
        %v913 = vadd.f32 %v911, %v912
        %v914 = vadd.f32 %v880, %v882
        %v915 = vadd.f32 %v914, %v885
        %v916 = vadd.f32 %v915, %v887
        %v917 = vadd.f32 %v916, %v890
        %v918 = vadd.f32 %v917, %v892
        %v919 = vsel %vm905, %v895, 0.0
        %v920 = vadd.f32 %v918, %v919
        %v921 = vrot.slane %v920, 4
        %v922 = vadd.f32 %v920, %v921
        %v923 = vrot.slane %v922, 2
        %v924 = vadd.f32 %v922, %v923
        %v925 = vrot.slane %v924, 1
        %v926 = vadd.f32 %v924, %v925
        %v927 = vmul.f32 %v913, 0.020408163
        %v928 = vmul.f32 %v926, 0.020408163
        %v929 = vmul.f32 %v824, %v824
        %v930 = vmul.f32 %v880, %v880
        %v931 = vmul.f32 %v826, %v826
        %v932 = vmul.f32 %v882, %v882
        %v933 = vmul.f32 %v829, %v829
        %v934 = vmul.f32 %v885, %v885
        %v935 = vmul.f32 %v831, %v831
        %v936 = vmul.f32 %v887, %v887
        %v937 = vmul.f32 %v834, %v834
        %v938 = vmul.f32 %v890, %v890
        %v939 = vmul.f32 %v836, %v836
        %v940 = vmul.f32 %v892, %v892
        %v941 = vmul.f32 %v839, %v839
        %v942 = vmul.f32 %v895, %v895
        %v943 = vadd.f32 %v929, %v931
        %v944 = vadd.f32 %v943, %v933
        %v945 = vadd.f32 %v944, %v935
        %v946 = vadd.f32 %v945, %v937
        %v947 = vadd.f32 %v946, %v939
        %v948 = vsel %vm905, %v941, 0.0
        %v949 = vadd.f32 %v947, %v948
        %v950 = vrot.slane %v949, 4
        %v951 = vadd.f32 %v949, %v950
        %v952 = vrot.slane %v951, 2
        %v953 = vadd.f32 %v951, %v952
        %v954 = vrot.slane %v953, 1
        %v955 = vadd.f32 %v953, %v954
        %v956 = vadd.f32 %v930, %v932
        %v957 = vadd.f32 %v956, %v934
        %v958 = vadd.f32 %v957, %v936
        %v959 = vadd.f32 %v958, %v938
        %v960 = vadd.f32 %v959, %v940
        %v961 = vsel %vm905, %v942, 0.0
        %v962 = vadd.f32 %v960, %v961
        %v963 = vrot.slane %v962, 4
        %v964 = vadd.f32 %v962, %v963
        %v965 = vrot.slane %v964, 2
        %v966 = vadd.f32 %v964, %v965
        %v967 = vrot.slane %v966, 1
        %v968 = vadd.f32 %v966, %v967
        %v969 = vmul.f32 %v955, 0.020408163
        %v970 = vmul.f32 %v968, 0.020408163
        %v971 = vmul.f32 %v927, %v927
        %v972 = vmul.f32 %v928, %v928
        %v973 = vsub.f32 %v969, %v971
        %v974 = vsub.f32 %v970, %v972
        %v975 = vadd.f32 %v973, 1e-05
        %v976 = vadd.f32 %v974, 1e-05
        %v977 = vrsqrt.pop %v975
        %v978 = vmul.f32 %v977, %v975
        %v979 = vmul.f32 %v978, %v977
        %v980 = vmul.f32 0.5, %v979
        %v981 = vsub.f32 1.5, %v980
        %v982 = vmul.f32 %v977, %v981
        %vm983 = vweird.f32 %v975
        %vm984 = vweird.f32 %v977
        %vm985 = vmor %vm983, %vm984
        %v986 = vsel %vm985, %v977, %v982
        %v987 = vrsqrt.pop %v976
        %v988 = vmul.f32 %v987, %v976
        %v989 = vmul.f32 %v988, %v987
        %v990 = vmul.f32 0.5, %v989
        %v991 = vsub.f32 1.5, %v990
        %v992 = vmul.f32 %v987, %v991
        %vm993 = vweird.f32 %v976
        %vm994 = vweird.f32 %v987
        %vm995 = vmor %vm993, %vm994
        %v996 = vsel %vm995, %v987, %v992
        %v999 = vrot.slane %v996, 7
        %v1000 = vsel %vm905, %v986, %v999
        %v1002 = vmul.f32 %v898, %v1000
        %v1004 = vperm.slane %v1002, 0
        %v1005 = vperm.slane %v1002, 1
        %v1008 = vmul.f32 %v927, %v1004
        %v1009 = vmul.f32 %v928, %v1005
        %v1012 = vrot.slane %v1009, 7
        %v1013 = vsel %vm905, %v1008, %v1012
        %v1015 = vsub.f32 %v899, %v1013
        %v1016 = vmul.f32 %v824, %v1004
        %v1017 = vmul.f32 %v880, %v1005
        %v1018 = vmul.f32 %v826, %v1004
        %v1019 = vmul.f32 %v882, %v1005
        %v1020 = vmul.f32 %v829, %v1004
        %v1021 = vmul.f32 %v885, %v1005
        %v1022 = vmul.f32 %v831, %v1004
        %v1023 = vmul.f32 %v887, %v1005
        %v1024 = vmul.f32 %v834, %v1004
        %v1025 = vmul.f32 %v890, %v1005
        %v1026 = vmul.f32 %v836, %v1004
        %v1027 = vmul.f32 %v892, %v1005
        %v1028 = vmul.f32 %v839, %v1004
        %v1029 = vmul.f32 %v895, %v1005
        %v1031 = vperm.slane %v1015, 0
        %v1032 = vperm.slane %v1015, 1
        %v1035 = vadd.f32 %v1016, %v1031
        %v1036 = vadd.f32 %v1017, %v1032
        %v1037 = vadd.f32 %v1018, %v1031
        %v1038 = vadd.f32 %v1019, %v1032
        %v1039 = vadd.f32 %v1020, %v1031
        %v1040 = vadd.f32 %v1021, %v1032
        %v1041 = vadd.f32 %v1022, %v1031
        %v1042 = vadd.f32 %v1023, %v1032
        %v1043 = vadd.f32 %v1024, %v1031
        %v1044 = vadd.f32 %v1025, %v1032
        %v1045 = vadd.f32 %v1026, %v1031
        %v1046 = vadd.f32 %v1027, %v1032
        %v1047 = vadd.f32 %v1028, %v1031
        %v1048 = vadd.f32 %v1029, %v1032
        %v1049 = vmax.f32 %v1035, 0.0
        %v1050 = vmax.f32 %v1036, 0.0
        %v1051 = vmax.f32 %v1037, 0.0
        %v1052 = vmax.f32 %v1038, 0.0
        %v1053 = vmax.f32 %v1039, 0.0
        %v1054 = vmax.f32 %v1040, 0.0
        %v1055 = vmax.f32 %v1041, 0.0
        %v1056 = vmax.f32 %v1042, 0.0
        %v1057 = vmax.f32 %v1043, 0.0
        %v1058 = vmax.f32 %v1044, 0.0
        %v1059 = vmax.f32 %v1045, 0.0
        %v1060 = vmax.f32 %v1046, 0.0
        %v1061 = vmax.f32 %v1047, 0.0
        %v1062 = vmax.f32 %v1048, 0.0
        %v1063 = vmin.f32 %v1049, 6.0
        %v1064 = vmin.f32 %v1050, 6.0
        %v1065 = vmin.f32 %v1051, 6.0
        %v1066 = vmin.f32 %v1052, 6.0
        %v1067 = vmin.f32 %v1053, 6.0
        %v1068 = vmin.f32 %v1054, 6.0
        %v1069 = vmin.f32 %v1055, 6.0
        %v1070 = vmin.f32 %v1056, 6.0
        %v1071 = vmin.f32 %v1057, 6.0
        %v1072 = vmin.f32 %v1058, 6.0
        %v1073 = vmin.f32 %v1059, 6.0
        %v1074 = vmin.f32 %v1060, 6.0
        %v1075 = vmin.f32 %v1061, 6.0
        %v1076 = vmin.f32 %v1062, 6.0
        %v1077 = vld [vmem:[%s1] sm:$0xff]
        %v1078 = vld [vmem:[%s1 + $0x8] sm:$0xff]
        %v1079 = vld [vmem:[%s1 + $0x10] sm:$0xff]
        %v1080 = vld [vmem:[%s1 + $0x18] sm:$0xff]
        %v1081 = vld [vmem:[%s1 + $0x20] sm:$0xff]
        %v1082 = vld [vmem:[%s1 + $0x28] sm:$0xff]
        %v1083 = vld [vmem:[%s1 + $0x30] sm:$0x1]
        %s1084 = scalar_lea.vmem %s1, 56
        %v1085 = vld [vmem:[%s1084] sm:$0xff]
        %v1086 = vld [vmem:[%s1084 + $0x8] sm:$0xff]
        %v1087 = vld [vmem:[%s1084 + $0x10] sm:$0xff]
        %v1088 = vld [vmem:[%s1084 + $0x18] sm:$0xff]
        %v1089 = vld [vmem:[%s1084 + $0x20] sm:$0xff]
        %v1090 = vld [vmem:[%s1084 + $0x28] sm:$0xff]
        %v1091 = vld [vmem:[%s1084 + $0x30] sm:$0x1]
        %s1092 = scalar_lea.vmem %s1, 112
        %v1093 = vld [vmem:[%s1092] sm:$0xff]
        %v1094 = vld [vmem:[%s1092 + $0x8] sm:$0xff]
        %v1095 = vld [vmem:[%s1092 + $0x10] sm:$0xff]
        %v1096 = vld [vmem:[%s1092 + $0x18] sm:$0xff]
        %v1097 = vld [vmem:[%s1092 + $0x20] sm:$0xff]
        %v1098 = vld [vmem:[%s1092 + $0x28] sm:$0xff]
        %v1099 = vld [vmem:[%s1092 + $0x30] sm:$0x1]
        %s1100 = scalar_lea.vmem %s1, 168
        %v1101 = vld [vmem:[%s1100] sm:$0xff]
        %v1102 = vld [vmem:[%s1100 + $0x8] sm:$0xff]
        %v1103 = vld [vmem:[%s1100 + $0x10] sm:$0xff]
        %v1104 = vld [vmem:[%s1100 + $0x18] sm:$0xff]
        %v1105 = vld [vmem:[%s1100 + $0x20] sm:$0xff]
        %v1106 = vld [vmem:[%s1100 + $0x28] sm:$0xff]
        %v1107 = vld [vmem:[%s1100 + $0x30] sm:$0x1]
        %vm1108 = vcmask 400384
        %v1110 = vsel %vm1108, %v1077, 0
        %v1113 = vsel %vm1108, %v1078, 0
        %v1116 = vsel %vm1108, %v1079, 0
        %v1119 = vsel %vm1108, %v1080, 0
        %v1122 = vsel %vm1108, %v1081, 0
        %v1125 = vsel %vm1108, %v1082, 0
        %v1128 = vsel %vm1108, %v1083, 0
        %v1131 = vsel %vm905, %v1075, 0
        %v1134 = vsel %vm905, %v1076, 0
        %1136 = vmatpush.msra.mxu0 0.0
        %1137 = vmatpush.msra.mxu0 0.0
        %1138 = vmatpush.msra.mxu0 0.0
        %1139 = vmatpush.msra.mxu0 0.0
        %1140 = vmatpush.msra.mxu0 0.0
        %1141 = vmatpush.msra.mxu0 0.0
        %1142 = vmatpush.msra.mxu0 0.0
        %1143 = vmatpush.msra.mxu0 0.0
        %1144 = vmatpush.msra.mxu0 0.0
        %1145 = vmatpush.msra.mxu0 %v1131
        %1146 = vmatpush.msra.mxu0 %v1073
        %1147 = vmatpush.msra.mxu0 %v1071
        %1148 = vmatpush.msra.mxu0 %v1069
        %1149 = vmatpush.msra.mxu0 %v1067
        %1150 = vmatpush.msra.mxu0 %v1065
        %1151 = vmatpush.msra.mxu0 %v1063
        %1152 = vmatmul.f32.gmra.mxu0 %v1110
        %v1153 = vpop.f32.mrf.mxu0
        %v1154 = vadd.f32 0.0, %v1153
        %1155 = vmatmul.f32.gmra.mxu0 %v1113
        %v1156 = vpop.f32.mrf.mxu0
        %v1157 = vadd.f32 0.0, %v1156
        %1158 = vmatmul.f32.gmra.mxu0 %v1116
        %v1159 = vpop.f32.mrf.mxu0
        %v1160 = vadd.f32 0.0, %v1159
        %1161 = vmatmul.f32.gmra.mxu0 %v1119
        %v1162 = vpop.f32.mrf.mxu0
        %v1163 = vadd.f32 0.0, %v1162
        %1164 = vmatmul.f32.gmra.mxu0 %v1122
        %v1165 = vpop.f32.mrf.mxu0
        %v1166 = vadd.f32 0.0, %v1165
        %1167 = vmatmul.f32.gmra.mxu0 %v1125
        %v1168 = vpop.f32.mrf.mxu0
        %v1169 = vadd.f32 0.0, %v1168
        %1170 = vmatmul.f32.gmra.mxu0 %v1128
        %v1171 = vpop.f32.mrf.mxu0
        %v1172 = vadd.f32 0.0, %v1171
        %1173 = vdwg.mxu0
        %1174 = vmatpush.msra.mxu0 0.0
        %1175 = vmatpush.msra.mxu0 0.0
        %1176 = vmatpush.msra.mxu0 0.0
        %1177 = vmatpush.msra.mxu0 0.0
        %1178 = vmatpush.msra.mxu0 0.0
        %1179 = vmatpush.msra.mxu0 0.0
        %1180 = vmatpush.msra.mxu0 0.0
        %1181 = vmatpush.msra.mxu0 0.0
        %1182 = vmatpush.msra.mxu0 0.0
        %1183 = vmatpush.msra.mxu0 %v1134
        %1184 = vmatpush.msra.mxu0 %v1074
        %1185 = vmatpush.msra.mxu0 %v1072
        %1186 = vmatpush.msra.mxu0 %v1070
        %1187 = vmatpush.msra.mxu0 %v1068
        %1188 = vmatpush.msra.mxu0 %v1066
        %1189 = vmatpush.msra.mxu0 %v1064
        %1190 = vmatmul.f32.gmra.mxu0 %v1110
        %v1191 = vpop.f32.mrf.mxu0
        %v1192 = vadd.f32 0.0, %v1191
        %1193 = vmatmul.f32.gmra.mxu0 %v1113
        %v1194 = vpop.f32.mrf.mxu0
        %v1195 = vadd.f32 0.0, %v1194
        %1196 = vmatmul.f32.gmra.mxu0 %v1116
        %v1197 = vpop.f32.mrf.mxu0
        %v1198 = vadd.f32 0.0, %v1197
        %1199 = vmatmul.f32.gmra.mxu0 %v1119
        %v1200 = vpop.f32.mrf.mxu0
        %v1201 = vadd.f32 0.0, %v1200
        %1202 = vmatmul.f32.gmra.mxu0 %v1122
        %v1203 = vpop.f32.mrf.mxu0
        %v1204 = vadd.f32 0.0, %v1203
        %1205 = vmatmul.f32.gmra.mxu0 %v1125
        %v1206 = vpop.f32.mrf.mxu0
        %v1207 = vadd.f32 0.0, %v1206
        %1208 = vmatmul.f32.gmra.mxu0 %v1128
        %v1209 = vpop.f32.mrf.mxu0
        %v1210 = vadd.f32 0.0, %v1209
        %1211 = vdwg.mxu0
        %v1213 = vsel %vm1108, %v1085, 0
        %v1216 = vsel %vm1108, %v1086, 0
        %v1219 = vsel %vm1108, %v1087, 0
        %v1222 = vsel %vm1108, %v1088, 0
        %v1225 = vsel %vm1108, %v1089, 0
        %v1228 = vsel %vm1108, %v1090, 0
        %v1231 = vsel %vm1108, %v1091, 0
        %1233 = vmatpush.msra.mxu0 0.0
        %1234 = vmatpush.msra.mxu0 0.0
        %1235 = vmatpush.msra.mxu0 0.0
        %1236 = vmatpush.msra.mxu0 0.0
        %1237 = vmatpush.msra.mxu0 0.0
        %1238 = vmatpush.msra.mxu0 0.0
        %1239 = vmatpush.msra.mxu0 0.0
        %1240 = vmatpush.msra.mxu0 0.0
        %1241 = vmatpush.msra.mxu0 0.0
        %1242 = vmatpush.msra.mxu0 %v1131
        %1243 = vmatpush.msra.mxu0 %v1073
        %1244 = vmatpush.msra.mxu0 %v1071
        %1245 = vmatpush.msra.mxu0 %v1069
        %1246 = vmatpush.msra.mxu0 %v1067
        %1247 = vmatpush.msra.mxu0 %v1065
        %1248 = vmatpush.msra.mxu0 %v1063
        %1249 = vmatmul.f32.gmra.mxu0 %v1213
        %v1250 = vpop.f32.mrf.mxu0
        %v1251 = vadd.f32 0.0, %v1250
        %1252 = vmatmul.f32.gmra.mxu0 %v1216
        %v1253 = vpop.f32.mrf.mxu0
        %v1254 = vadd.f32 0.0, %v1253
        %1255 = vmatmul.f32.gmra.mxu0 %v1219
        %v1256 = vpop.f32.mrf.mxu0
        %v1257 = vadd.f32 0.0, %v1256
        %1258 = vmatmul.f32.gmra.mxu0 %v1222
        %v1259 = vpop.f32.mrf.mxu0
        %v1260 = vadd.f32 0.0, %v1259
        %1261 = vmatmul.f32.gmra.mxu0 %v1225
        %v1262 = vpop.f32.mrf.mxu0
        %v1263 = vadd.f32 0.0, %v1262
        %1264 = vmatmul.f32.gmra.mxu0 %v1228
        %v1265 = vpop.f32.mrf.mxu0
        %v1266 = vadd.f32 0.0, %v1265
        %1267 = vmatmul.f32.gmra.mxu0 %v1231
        %v1268 = vpop.f32.mrf.mxu0
        %v1269 = vadd.f32 0.0, %v1268
        %1270 = vdwg.mxu0
        %1271 = vmatpush.msra.mxu0 0.0
        %1272 = vmatpush.msra.mxu0 0.0
        %1273 = vmatpush.msra.mxu0 0.0
        %1274 = vmatpush.msra.mxu0 0.0
        %1275 = vmatpush.msra.mxu0 0.0
        %1276 = vmatpush.msra.mxu0 0.0
        %1277 = vmatpush.msra.mxu0 0.0
        %1278 = vmatpush.msra.mxu0 0.0
        %1279 = vmatpush.msra.mxu0 0.0
        %1280 = vmatpush.msra.mxu0 %v1134
        %1281 = vmatpush.msra.mxu0 %v1074
        %1282 = vmatpush.msra.mxu0 %v1072
        %1283 = vmatpush.msra.mxu0 %v1070
        %1284 = vmatpush.msra.mxu0 %v1068
        %1285 = vmatpush.msra.mxu0 %v1066
        %1286 = vmatpush.msra.mxu0 %v1064
        %1287 = vmatmul.f32.gmra.mxu0 %v1213
        %v1288 = vpop.f32.mrf.mxu0
        %v1289 = vadd.f32 0.0, %v1288
        %1290 = vmatmul.f32.gmra.mxu0 %v1216
        %v1291 = vpop.f32.mrf.mxu0
        %v1292 = vadd.f32 0.0, %v1291
        %1293 = vmatmul.f32.gmra.mxu0 %v1219
        %v1294 = vpop.f32.mrf.mxu0
        %v1295 = vadd.f32 0.0, %v1294
        %1296 = vmatmul.f32.gmra.mxu0 %v1222
        %v1297 = vpop.f32.mrf.mxu0
        %v1298 = vadd.f32 0.0, %v1297
        %1299 = vmatmul.f32.gmra.mxu0 %v1225
        %v1300 = vpop.f32.mrf.mxu0
        %v1301 = vadd.f32 0.0, %v1300
        %1302 = vmatmul.f32.gmra.mxu0 %v1228
        %v1303 = vpop.f32.mrf.mxu0
        %v1304 = vadd.f32 0.0, %v1303
        %1305 = vmatmul.f32.gmra.mxu0 %v1231
        %v1306 = vpop.f32.mrf.mxu0
        %v1307 = vadd.f32 0.0, %v1306
        %1308 = vdwg.mxu0
        %v1309 = vld [vmem:[%s505] sm:$0xff]
        %v1310 = vld [vmem:[%s505 + $0x8] sm:$0xff]
        %v1311 = vld [vmem:[%s505 + $0x10] sm:$0x1]
        %v1312 = vld [vmem:[%s505 + $0x18] sm:$0x1]
        %v1313 = vperm.slane %v1309, 3
        %v1314 = vperm.slane %v1310, 3
        %v1315 = vmul.f32 %v1154, %v1313
        %v1316 = vmul.f32 %v1192, %v1314
        %v1317 = vmul.f32 %v1157, %v1313
        %v1318 = vmul.f32 %v1195, %v1314
        %v1319 = vmul.f32 %v1160, %v1313
        %v1320 = vmul.f32 %v1198, %v1314
        %v1321 = vmul.f32 %v1163, %v1313
        %v1322 = vmul.f32 %v1201, %v1314
        %v1323 = vmul.f32 %v1166, %v1313
        %v1324 = vmul.f32 %v1204, %v1314
        %v1325 = vmul.f32 %v1169, %v1313
        %v1326 = vmul.f32 %v1207, %v1314
        %v1327 = vmul.f32 %v1172, %v1313
        %v1328 = vmul.f32 %v1210, %v1314
        %v1329 = vperm.slane %v1309, 4
        %v1330 = vperm.slane %v1310, 4
        %v1331 = vmul.f32 %v1063, %v1329
        %v1332 = vmul.f32 %v1064, %v1330
        %v1333 = vmul.f32 %v1065, %v1329
        %v1334 = vmul.f32 %v1066, %v1330
        %v1335 = vmul.f32 %v1067, %v1329
        %v1336 = vmul.f32 %v1068, %v1330
        %v1337 = vmul.f32 %v1069, %v1329
        %v1338 = vmul.f32 %v1070, %v1330
        %v1339 = vmul.f32 %v1071, %v1329
        %v1340 = vmul.f32 %v1072, %v1330
        %v1341 = vmul.f32 %v1073, %v1329
        %v1342 = vmul.f32 %v1074, %v1330
        %v1343 = vmul.f32 %v1075, %v1329
        %v1344 = vmul.f32 %v1076, %v1330
        %v1345 = vadd.f32 %v1315, %v1331
        %v1346 = vadd.f32 %v1316, %v1332
        %v1347 = vadd.f32 %v1317, %v1333
        %v1348 = vadd.f32 %v1318, %v1334
        %v1349 = vadd.f32 %v1319, %v1335
        %v1350 = vadd.f32 %v1320, %v1336
        %v1351 = vadd.f32 %v1321, %v1337
        %v1352 = vadd.f32 %v1322, %v1338
        %v1353 = vadd.f32 %v1323, %v1339
        %v1354 = vadd.f32 %v1324, %v1340
        %v1355 = vadd.f32 %v1325, %v1341
        %v1356 = vadd.f32 %v1326, %v1342
        %v1357 = vadd.f32 %v1327, %v1343
        %v1358 = vadd.f32 %v1328, %v1344
        %v1359 = vperm.slane %v1309, 5
        %v1360 = vperm.slane %v1310, 5
        %v1361 = vmul.f32 %v1251, %v1359
        %v1362 = vmul.f32 %v1289, %v1360
        %v1363 = vmul.f32 %v1254, %v1359
        %v1364 = vmul.f32 %v1292, %v1360
        %v1365 = vmul.f32 %v1257, %v1359
        %v1366 = vmul.f32 %v1295, %v1360
        %v1367 = vmul.f32 %v1260, %v1359
        %v1368 = vmul.f32 %v1298, %v1360
        %v1369 = vmul.f32 %v1263, %v1359
        %v1370 = vmul.f32 %v1301, %v1360
        %v1371 = vmul.f32 %v1266, %v1359
        %v1372 = vmul.f32 %v1304, %v1360
        %v1373 = vmul.f32 %v1269, %v1359
        %v1374 = vmul.f32 %v1307, %v1360
        %v1375 = vadd.f32 %v1345, %v1361
        %v1376 = vadd.f32 %v1346, %v1362
        %v1377 = vadd.f32 %v1347, %v1363
        %v1378 = vadd.f32 %v1348, %v1364
        %v1379 = vadd.f32 %v1349, %v1365
        %v1380 = vadd.f32 %v1350, %v1366
        %v1381 = vadd.f32 %v1351, %v1367
        %v1382 = vadd.f32 %v1352, %v1368
        %v1383 = vadd.f32 %v1353, %v1369
        %v1384 = vadd.f32 %v1354, %v1370
        %v1385 = vadd.f32 %v1355, %v1371
        %v1386 = vadd.f32 %v1356, %v1372
        %v1387 = vadd.f32 %v1357, %v1373
        %v1388 = vadd.f32 %v1358, %v1374
        %v1389 = vperm.slane %v1309, 0
        %v1390 = vperm.slane %v1310, 0
        %v1391 = vmul.f32 %v1154, %v1389
        %v1392 = vmul.f32 %v1192, %v1390
        %v1393 = vmul.f32 %v1157, %v1389
        %v1394 = vmul.f32 %v1195, %v1390
        %v1395 = vmul.f32 %v1160, %v1389
        %v1396 = vmul.f32 %v1198, %v1390
        %v1397 = vmul.f32 %v1163, %v1389
        %v1398 = vmul.f32 %v1201, %v1390
        %v1399 = vmul.f32 %v1166, %v1389
        %v1400 = vmul.f32 %v1204, %v1390
        %v1401 = vmul.f32 %v1169, %v1389
        %v1402 = vmul.f32 %v1207, %v1390
        %v1403 = vmul.f32 %v1172, %v1389
        %v1404 = vmul.f32 %v1210, %v1390
        %v1405 = vperm.slane %v1309, 1
        %v1406 = vperm.slane %v1310, 1
        %v1407 = vmul.f32 %v1063, %v1405
        %v1408 = vmul.f32 %v1064, %v1406
        %v1409 = vmul.f32 %v1065, %v1405
        %v1410 = vmul.f32 %v1066, %v1406
        %v1411 = vmul.f32 %v1067, %v1405
        %v1412 = vmul.f32 %v1068, %v1406
        %v1413 = vmul.f32 %v1069, %v1405
        %v1414 = vmul.f32 %v1070, %v1406
        %v1415 = vmul.f32 %v1071, %v1405
        %v1416 = vmul.f32 %v1072, %v1406
        %v1417 = vmul.f32 %v1073, %v1405
        %v1418 = vmul.f32 %v1074, %v1406
        %v1419 = vmul.f32 %v1075, %v1405
        %v1420 = vmul.f32 %v1076, %v1406
        %v1421 = vadd.f32 %v1391, %v1407
        %v1422 = vadd.f32 %v1392, %v1408
        %v1423 = vadd.f32 %v1393, %v1409
        %v1424 = vadd.f32 %v1394, %v1410
        %v1425 = vadd.f32 %v1395, %v1411
        %v1426 = vadd.f32 %v1396, %v1412
        %v1427 = vadd.f32 %v1397, %v1413
        %v1428 = vadd.f32 %v1398, %v1414
        %v1429 = vadd.f32 %v1399, %v1415
        %v1430 = vadd.f32 %v1400, %v1416
        %v1431 = vadd.f32 %v1401, %v1417
        %v1432 = vadd.f32 %v1402, %v1418
        %v1433 = vadd.f32 %v1403, %v1419
        %v1434 = vadd.f32 %v1404, %v1420
        %v1435 = vperm.slane %v1309, 2
        %v1436 = vperm.slane %v1310, 2
        %v1437 = vmul.f32 %v1251, %v1435
        %v1438 = vmul.f32 %v1289, %v1436
        %v1439 = vmul.f32 %v1254, %v1435
        %v1440 = vmul.f32 %v1292, %v1436
        %v1441 = vmul.f32 %v1257, %v1435
        %v1442 = vmul.f32 %v1295, %v1436
        %v1443 = vmul.f32 %v1260, %v1435
        %v1444 = vmul.f32 %v1298, %v1436
        %v1445 = vmul.f32 %v1263, %v1435
        %v1446 = vmul.f32 %v1301, %v1436
        %v1447 = vmul.f32 %v1266, %v1435
        %v1448 = vmul.f32 %v1304, %v1436
        %v1449 = vmul.f32 %v1269, %v1435
        %v1450 = vmul.f32 %v1307, %v1436
        %v1451 = vadd.f32 %v1421, %v1437
        %v1452 = vadd.f32 %v1422, %v1438
        %v1453 = vadd.f32 %v1423, %v1439
        %v1454 = vadd.f32 %v1424, %v1440
        %v1455 = vadd.f32 %v1425, %v1441
        %v1456 = vadd.f32 %v1426, %v1442
        %v1457 = vadd.f32 %v1427, %v1443
        %v1458 = vadd.f32 %v1428, %v1444
        %v1459 = vadd.f32 %v1429, %v1445
        %v1460 = vadd.f32 %v1430, %v1446
        %v1461 = vadd.f32 %v1431, %v1447
        %v1462 = vadd.f32 %v1432, %v1448
        %v1463 = vadd.f32 %v1433, %v1449
        %v1464 = vadd.f32 %v1434, %v1450
        %v1466 = vsel %vm1108, %v1093, 0
        %v1469 = vsel %vm1108, %v1094, 0
        %v1472 = vsel %vm1108, %v1095, 0
        %v1475 = vsel %vm1108, %v1096, 0
        %v1478 = vsel %vm1108, %v1097, 0
        %v1481 = vsel %vm1108, %v1098, 0
        %v1484 = vsel %vm1108, %v1099, 0
        %v1487 = vsel %vm905, %v1463, 0
        %v1490 = vsel %vm905, %v1464, 0
        %1492 = vmatpush.msra.mxu0 0.0
        %1493 = vmatpush.msra.mxu0 0.0
        %1494 = vmatpush.msra.mxu0 0.0
        %1495 = vmatpush.msra.mxu0 0.0
        %1496 = vmatpush.msra.mxu0 0.0
        %1497 = vmatpush.msra.mxu0 0.0
        %1498 = vmatpush.msra.mxu0 0.0
        %1499 = vmatpush.msra.mxu0 0.0
        %1500 = vmatpush.msra.mxu0 0.0
        %1501 = vmatpush.msra.mxu0 %v1487
        %1502 = vmatpush.msra.mxu0 %v1461
        %1503 = vmatpush.msra.mxu0 %v1459
        %1504 = vmatpush.msra.mxu0 %v1457
        %1505 = vmatpush.msra.mxu0 %v1455
        %1506 = vmatpush.msra.mxu0 %v1453
        %1507 = vmatpush.msra.mxu0 %v1451
        %1508 = vmatmul.f32.gmra.mxu0 %v1466
        %v1509 = vpop.f32.mrf.mxu0
        %v1510 = vadd.f32 0.0, %v1509
        %1511 = vmatmul.f32.gmra.mxu0 %v1469
        %v1512 = vpop.f32.mrf.mxu0
        %v1513 = vadd.f32 0.0, %v1512
        %1514 = vmatmul.f32.gmra.mxu0 %v1472
        %v1515 = vpop.f32.mrf.mxu0
        %v1516 = vadd.f32 0.0, %v1515
        %1517 = vmatmul.f32.gmra.mxu0 %v1475
        %v1518 = vpop.f32.mrf.mxu0
        %v1519 = vadd.f32 0.0, %v1518
        %1520 = vmatmul.f32.gmra.mxu0 %v1478
        %v1521 = vpop.f32.mrf.mxu0
        %v1522 = vadd.f32 0.0, %v1521
        %1523 = vmatmul.f32.gmra.mxu0 %v1481
        %v1524 = vpop.f32.mrf.mxu0
        %v1525 = vadd.f32 0.0, %v1524
        %1526 = vmatmul.f32.gmra.mxu0 %v1484
        %v1527 = vpop.f32.mrf.mxu0
        %v1528 = vadd.f32 0.0, %v1527
        %1529 = vdwg.mxu0
        %1530 = vmatpush.msra.mxu0 0.0
        %1531 = vmatpush.msra.mxu0 0.0
        %1532 = vmatpush.msra.mxu0 0.0
        %1533 = vmatpush.msra.mxu0 0.0
        %1534 = vmatpush.msra.mxu0 0.0
        %1535 = vmatpush.msra.mxu0 0.0
        %1536 = vmatpush.msra.mxu0 0.0
        %1537 = vmatpush.msra.mxu0 0.0
        %1538 = vmatpush.msra.mxu0 0.0
        %1539 = vmatpush.msra.mxu0 %v1490
        %1540 = vmatpush.msra.mxu0 %v1462
        %1541 = vmatpush.msra.mxu0 %v1460
        %1542 = vmatpush.msra.mxu0 %v1458
        %1543 = vmatpush.msra.mxu0 %v1456
        %1544 = vmatpush.msra.mxu0 %v1454
        %1545 = vmatpush.msra.mxu0 %v1452
        %1546 = vmatmul.f32.gmra.mxu0 %v1466
        %v1547 = vpop.f32.mrf.mxu0
        %v1548 = vadd.f32 0.0, %v1547
        %1549 = vmatmul.f32.gmra.mxu0 %v1469
        %v1550 = vpop.f32.mrf.mxu0
        %v1551 = vadd.f32 0.0, %v1550
        %1552 = vmatmul.f32.gmra.mxu0 %v1472
        %v1553 = vpop.f32.mrf.mxu0
        %v1554 = vadd.f32 0.0, %v1553
        %1555 = vmatmul.f32.gmra.mxu0 %v1475
        %v1556 = vpop.f32.mrf.mxu0
        %v1557 = vadd.f32 0.0, %v1556
        %1558 = vmatmul.f32.gmra.mxu0 %v1478
        %v1559 = vpop.f32.mrf.mxu0
        %v1560 = vadd.f32 0.0, %v1559
        %1561 = vmatmul.f32.gmra.mxu0 %v1481
        %v1562 = vpop.f32.mrf.mxu0
        %v1563 = vadd.f32 0.0, %v1562
        %1564 = vmatmul.f32.gmra.mxu0 %v1484
        %v1565 = vpop.f32.mrf.mxu0
        %v1566 = vadd.f32 0.0, %v1565
        %1567 = vdwg.mxu0
        %v1568 = vadd.f32 %v1375, %v1510
        %v1569 = vadd.f32 %v1376, %v1548
        %v1570 = vadd.f32 %v1377, %v1513
        %v1571 = vadd.f32 %v1378, %v1551
        %v1572 = vadd.f32 %v1379, %v1516
        %v1573 = vadd.f32 %v1380, %v1554
        %v1574 = vadd.f32 %v1381, %v1519
        %v1575 = vadd.f32 %v1382, %v1557
        %v1576 = vadd.f32 %v1383, %v1522
        %v1577 = vadd.f32 %v1384, %v1560
        %v1578 = vadd.f32 %v1385, %v1525
        %v1579 = vadd.f32 %v1386, %v1563
        %v1580 = vadd.f32 %v1387, %v1528
        %v1581 = vadd.f32 %v1388, %v1566
        %v1582 = vperm.slane %v1309, 6
        %v1583 = vperm.slane %v1310, 6
        %v1584 = vmul.f32 %v1154, %v1582
        %v1585 = vmul.f32 %v1192, %v1583
        %v1586 = vmul.f32 %v1157, %v1582
        %v1587 = vmul.f32 %v1195, %v1583
        %v1588 = vmul.f32 %v1160, %v1582
        %v1589 = vmul.f32 %v1198, %v1583
        %v1590 = vmul.f32 %v1163, %v1582
        %v1591 = vmul.f32 %v1201, %v1583
        %v1592 = vmul.f32 %v1166, %v1582
        %v1593 = vmul.f32 %v1204, %v1583
        %v1594 = vmul.f32 %v1169, %v1582
        %v1595 = vmul.f32 %v1207, %v1583
        %v1596 = vmul.f32 %v1172, %v1582
        %v1597 = vmul.f32 %v1210, %v1583
        %v1598 = vperm.slane %v1309, 7
        %v1599 = vperm.slane %v1310, 7
        %v1600 = vmul.f32 %v1063, %v1598
        %v1601 = vmul.f32 %v1064, %v1599
        %v1602 = vmul.f32 %v1065, %v1598
        %v1603 = vmul.f32 %v1066, %v1599
        %v1604 = vmul.f32 %v1067, %v1598
        %v1605 = vmul.f32 %v1068, %v1599
        %v1606 = vmul.f32 %v1069, %v1598
        %v1607 = vmul.f32 %v1070, %v1599
        %v1608 = vmul.f32 %v1071, %v1598
        %v1609 = vmul.f32 %v1072, %v1599
        %v1610 = vmul.f32 %v1073, %v1598
        %v1611 = vmul.f32 %v1074, %v1599
        %v1612 = vmul.f32 %v1075, %v1598
        %v1613 = vmul.f32 %v1076, %v1599
        %v1614 = vadd.f32 %v1584, %v1600
        %v1615 = vadd.f32 %v1585, %v1601
        %v1616 = vadd.f32 %v1586, %v1602
        %v1617 = vadd.f32 %v1587, %v1603
        %v1618 = vadd.f32 %v1588, %v1604
        %v1619 = vadd.f32 %v1589, %v1605
        %v1620 = vadd.f32 %v1590, %v1606
        %v1621 = vadd.f32 %v1591, %v1607
        %v1622 = vadd.f32 %v1592, %v1608
        %v1623 = vadd.f32 %v1593, %v1609
        %v1624 = vadd.f32 %v1594, %v1610
        %v1625 = vadd.f32 %v1595, %v1611
        %v1626 = vadd.f32 %v1596, %v1612
        %v1627 = vadd.f32 %v1597, %v1613
        %v1628 = vperm.slane %v1311, 0
        %v1629 = vperm.slane %v1312, 0
        %v1630 = vmul.f32 %v1251, %v1628
        %v1631 = vmul.f32 %v1289, %v1629
        %v1632 = vmul.f32 %v1254, %v1628
        %v1633 = vmul.f32 %v1292, %v1629
        %v1634 = vmul.f32 %v1257, %v1628
        %v1635 = vmul.f32 %v1295, %v1629
        %v1636 = vmul.f32 %v1260, %v1628
        %v1637 = vmul.f32 %v1298, %v1629
        %v1638 = vmul.f32 %v1263, %v1628
        %v1639 = vmul.f32 %v1301, %v1629
        %v1640 = vmul.f32 %v1266, %v1628
        %v1641 = vmul.f32 %v1304, %v1629
        %v1642 = vmul.f32 %v1269, %v1628
        %v1643 = vmul.f32 %v1307, %v1629
        %v1644 = vadd.f32 %v1614, %v1630
        %v1645 = vadd.f32 %v1615, %v1631
        %v1646 = vadd.f32 %v1616, %v1632
        %v1647 = vadd.f32 %v1617, %v1633
        %v1648 = vadd.f32 %v1618, %v1634
        %v1649 = vadd.f32 %v1619, %v1635
        %v1650 = vadd.f32 %v1620, %v1636
        %v1651 = vadd.f32 %v1621, %v1637
        %v1652 = vadd.f32 %v1622, %v1638
        %v1653 = vadd.f32 %v1623, %v1639
        %v1654 = vadd.f32 %v1624, %v1640
        %v1655 = vadd.f32 %v1625, %v1641
        %v1656 = vadd.f32 %v1626, %v1642
        %v1657 = vadd.f32 %v1627, %v1643
        %v1659 = vsel %vm1108, %v1101, 0
        %v1662 = vsel %vm1108, %v1102, 0
        %v1665 = vsel %vm1108, %v1103, 0
        %v1668 = vsel %vm1108, %v1104, 0
        %v1671 = vsel %vm1108, %v1105, 0
        %v1674 = vsel %vm1108, %v1106, 0
        %v1677 = vsel %vm1108, %v1107, 0
        %v1680 = vsel %vm905, %v1656, 0
        %v1683 = vsel %vm905, %v1657, 0
        %1685 = vmatpush.msra.mxu0 0.0
        %1686 = vmatpush.msra.mxu0 0.0
        %1687 = vmatpush.msra.mxu0 0.0
        %1688 = vmatpush.msra.mxu0 0.0
        %1689 = vmatpush.msra.mxu0 0.0
        %1690 = vmatpush.msra.mxu0 0.0
        %1691 = vmatpush.msra.mxu0 0.0
        %1692 = vmatpush.msra.mxu0 0.0
        %1693 = vmatpush.msra.mxu0 0.0
        %1694 = vmatpush.msra.mxu0 %v1680
        %1695 = vmatpush.msra.mxu0 %v1654
        %1696 = vmatpush.msra.mxu0 %v1652
        %1697 = vmatpush.msra.mxu0 %v1650
        %1698 = vmatpush.msra.mxu0 %v1648
        %1699 = vmatpush.msra.mxu0 %v1646
        %1700 = vmatpush.msra.mxu0 %v1644
        %1701 = vmatmul.f32.gmra.mxu0 %v1659
        %v1702 = vpop.f32.mrf.mxu0
        %v1703 = vadd.f32 0.0, %v1702
        %1704 = vmatmul.f32.gmra.mxu0 %v1662
        %v1705 = vpop.f32.mrf.mxu0
        %v1706 = vadd.f32 0.0, %v1705
        %1707 = vmatmul.f32.gmra.mxu0 %v1665
        %v1708 = vpop.f32.mrf.mxu0
        %v1709 = vadd.f32 0.0, %v1708
        %1710 = vmatmul.f32.gmra.mxu0 %v1668
        %v1711 = vpop.f32.mrf.mxu0
        %v1712 = vadd.f32 0.0, %v1711
        %1713 = vmatmul.f32.gmra.mxu0 %v1671
        %v1714 = vpop.f32.mrf.mxu0
        %v1715 = vadd.f32 0.0, %v1714
        %1716 = vmatmul.f32.gmra.mxu0 %v1674
        %v1717 = vpop.f32.mrf.mxu0
        %v1718 = vadd.f32 0.0, %v1717
        %1719 = vmatmul.f32.gmra.mxu0 %v1677
        %v1720 = vpop.f32.mrf.mxu0
        %v1721 = vadd.f32 0.0, %v1720
        %1722 = vdwg.mxu0
        %1723 = vmatpush.msra.mxu0 0.0
        %1724 = vmatpush.msra.mxu0 0.0
        %1725 = vmatpush.msra.mxu0 0.0
        %1726 = vmatpush.msra.mxu0 0.0
        %1727 = vmatpush.msra.mxu0 0.0
        %1728 = vmatpush.msra.mxu0 0.0
        %1729 = vmatpush.msra.mxu0 0.0
        %1730 = vmatpush.msra.mxu0 0.0
        %1731 = vmatpush.msra.mxu0 0.0
        %1732 = vmatpush.msra.mxu0 %v1683
        %1733 = vmatpush.msra.mxu0 %v1655
        %1734 = vmatpush.msra.mxu0 %v1653
        %1735 = vmatpush.msra.mxu0 %v1651
        %1736 = vmatpush.msra.mxu0 %v1649
        %1737 = vmatpush.msra.mxu0 %v1647
        %1738 = vmatpush.msra.mxu0 %v1645
        %1739 = vmatmul.f32.gmra.mxu0 %v1659
        %v1740 = vpop.f32.mrf.mxu0
        %v1741 = vadd.f32 0.0, %v1740
        %1742 = vmatmul.f32.gmra.mxu0 %v1662
        %v1743 = vpop.f32.mrf.mxu0
        %v1744 = vadd.f32 0.0, %v1743
        %1745 = vmatmul.f32.gmra.mxu0 %v1665
        %v1746 = vpop.f32.mrf.mxu0
        %v1747 = vadd.f32 0.0, %v1746
        %1748 = vmatmul.f32.gmra.mxu0 %v1668
        %v1749 = vpop.f32.mrf.mxu0
        %v1750 = vadd.f32 0.0, %v1749
        %1751 = vmatmul.f32.gmra.mxu0 %v1671
        %v1752 = vpop.f32.mrf.mxu0
        %v1753 = vadd.f32 0.0, %v1752
        %1754 = vmatmul.f32.gmra.mxu0 %v1674
        %v1755 = vpop.f32.mrf.mxu0
        %v1756 = vadd.f32 0.0, %v1755
        %1757 = vmatmul.f32.gmra.mxu0 %v1677
        %v1758 = vpop.f32.mrf.mxu0
        %v1759 = vadd.f32 0.0, %v1758
        %1760 = vdwg.mxu0
        %v1761 = vadd.f32 %v1568, %v1703
        %v1762 = vadd.f32 %v1569, %v1741
        %v1763 = vadd.f32 %v1570, %v1706
        %v1764 = vadd.f32 %v1571, %v1744
        %v1765 = vadd.f32 %v1572, %v1709
        %v1766 = vadd.f32 %v1573, %v1747
        %v1767 = vadd.f32 %v1574, %v1712
        %v1768 = vadd.f32 %v1575, %v1750
        %v1769 = vadd.f32 %v1576, %v1715
        %v1770 = vadd.f32 %v1577, %v1753
        %v1771 = vadd.f32 %v1578, %v1718
        %v1772 = vadd.f32 %v1579, %v1756
        %v1773 = vadd.f32 %v1580, %v1721
        %v1774 = vadd.f32 %v1581, %v1759
        %v1775 = vld [vmem:[%s586] sm:$0x3]
        %v1776 = vld [vmem:[%s591] sm:$0x3]
        %v1777 = vadd.f32 %v1761, %v1763
        %v1778 = vadd.f32 %v1777, %v1765
        %v1779 = vadd.f32 %v1778, %v1767
        %v1780 = vadd.f32 %v1779, %v1769
        %v1781 = vadd.f32 %v1780, %v1771
        %v1782 = vsel %vm905, %v1773, 0.0
        %v1783 = vadd.f32 %v1781, %v1782
        %v1784 = vrot.slane %v1783, 4
        %v1785 = vadd.f32 %v1783, %v1784
        %v1786 = vrot.slane %v1785, 2
        %v1787 = vadd.f32 %v1785, %v1786
        %v1788 = vrot.slane %v1787, 1
        %v1789 = vadd.f32 %v1787, %v1788
        %v1790 = vadd.f32 %v1762, %v1764
        %v1791 = vadd.f32 %v1790, %v1766
        %v1792 = vadd.f32 %v1791, %v1768
        %v1793 = vadd.f32 %v1792, %v1770
        %v1794 = vadd.f32 %v1793, %v1772
        %v1795 = vsel %vm905, %v1774, 0.0
        %v1796 = vadd.f32 %v1794, %v1795
        %v1797 = vrot.slane %v1796, 4
        %v1798 = vadd.f32 %v1796, %v1797
        %v1799 = vrot.slane %v1798, 2
        %v1800 = vadd.f32 %v1798, %v1799
        %v1801 = vrot.slane %v1800, 1
        %v1802 = vadd.f32 %v1800, %v1801
        %v1803 = vmul.f32 %v1789, 0.020408163
        %v1804 = vmul.f32 %v1802, 0.020408163
        %v1805 = vmul.f32 %v1761, %v1761
        %v1806 = vmul.f32 %v1762, %v1762
        %v1807 = vmul.f32 %v1763, %v1763
        %v1808 = vmul.f32 %v1764, %v1764
        %v1809 = vmul.f32 %v1765, %v1765
        %v1810 = vmul.f32 %v1766, %v1766
        %v1811 = vmul.f32 %v1767, %v1767
        %v1812 = vmul.f32 %v1768, %v1768
        %v1813 = vmul.f32 %v1769, %v1769
        %v1814 = vmul.f32 %v1770, %v1770
        %v1815 = vmul.f32 %v1771, %v1771
        %v1816 = vmul.f32 %v1772, %v1772
        %v1817 = vmul.f32 %v1773, %v1773
        %v1818 = vmul.f32 %v1774, %v1774
        %v1819 = vadd.f32 %v1805, %v1807
        %v1820 = vadd.f32 %v1819, %v1809
        %v1821 = vadd.f32 %v1820, %v1811
        %v1822 = vadd.f32 %v1821, %v1813
        %v1823 = vadd.f32 %v1822, %v1815
        %v1824 = vsel %vm905, %v1817, 0.0
        %v1825 = vadd.f32 %v1823, %v1824
        %v1826 = vrot.slane %v1825, 4
        %v1827 = vadd.f32 %v1825, %v1826
        %v1828 = vrot.slane %v1827, 2
        %v1829 = vadd.f32 %v1827, %v1828
        %v1830 = vrot.slane %v1829, 1
        %v1831 = vadd.f32 %v1829, %v1830
        %v1832 = vadd.f32 %v1806, %v1808
        %v1833 = vadd.f32 %v1832, %v1810
        %v1834 = vadd.f32 %v1833, %v1812
        %v1835 = vadd.f32 %v1834, %v1814
        %v1836 = vadd.f32 %v1835, %v1816
        %v1837 = vsel %vm905, %v1818, 0.0
        %v1838 = vadd.f32 %v1836, %v1837
        %v1839 = vrot.slane %v1838, 4
        %v1840 = vadd.f32 %v1838, %v1839
        %v1841 = vrot.slane %v1840, 2
        %v1842 = vadd.f32 %v1840, %v1841
        %v1843 = vrot.slane %v1842, 1
        %v1844 = vadd.f32 %v1842, %v1843
        %v1845 = vmul.f32 %v1831, 0.020408163
        %v1846 = vmul.f32 %v1844, 0.020408163
        %v1847 = vmul.f32 %v1803, %v1803
        %v1848 = vmul.f32 %v1804, %v1804
        %v1849 = vsub.f32 %v1845, %v1847
        %v1850 = vsub.f32 %v1846, %v1848
        %v1851 = vadd.f32 %v1849, 1e-05
        %v1852 = vadd.f32 %v1850, 1e-05
        %v1853 = vrsqrt.pop %v1851
        %v1854 = vmul.f32 %v1853, %v1851
        %v1855 = vmul.f32 %v1854, %v1853
        %v1856 = vmul.f32 0.5, %v1855
        %v1857 = vsub.f32 1.5, %v1856
        %v1858 = vmul.f32 %v1853, %v1857
        %vm1859 = vweird.f32 %v1851
        %vm1860 = vweird.f32 %v1853
        %vm1861 = vmor %vm1859, %vm1860
        %v1862 = vsel %vm1861, %v1853, %v1858
        %v1863 = vrsqrt.pop %v1852
        %v1864 = vmul.f32 %v1863, %v1852
        %v1865 = vmul.f32 %v1864, %v1863
        %v1866 = vmul.f32 0.5, %v1865
        %v1867 = vsub.f32 1.5, %v1866
        %v1868 = vmul.f32 %v1863, %v1867
        %vm1869 = vweird.f32 %v1852
        %vm1870 = vweird.f32 %v1863
        %vm1871 = vmor %vm1869, %vm1870
        %v1872 = vsel %vm1871, %v1863, %v1868
        %v1875 = vrot.slane %v1872, 7
        %v1876 = vsel %vm905, %v1862, %v1875
        %v1878 = vmul.f32 %v1775, %v1876
        %v1880 = vperm.slane %v1878, 0
        %v1881 = vperm.slane %v1878, 1
        %v1884 = vmul.f32 %v1803, %v1880
        %v1885 = vmul.f32 %v1804, %v1881
        %v1888 = vrot.slane %v1885, 7
        %v1889 = vsel %vm905, %v1884, %v1888
        %v1891 = vsub.f32 %v1776, %v1889
        %v1892 = vmul.f32 %v1761, %v1880
        %v1893 = vmul.f32 %v1762, %v1881
        %v1894 = vmul.f32 %v1763, %v1880
        %v1895 = vmul.f32 %v1764, %v1881
        %v1896 = vmul.f32 %v1765, %v1880
        %v1897 = vmul.f32 %v1766, %v1881
        %v1898 = vmul.f32 %v1767, %v1880
        %v1899 = vmul.f32 %v1768, %v1881
        %v1900 = vmul.f32 %v1769, %v1880
        %v1901 = vmul.f32 %v1770, %v1881
        %v1902 = vmul.f32 %v1771, %v1880
        %v1903 = vmul.f32 %v1772, %v1881
        %v1904 = vmul.f32 %v1773, %v1880
        %v1905 = vmul.f32 %v1774, %v1881
        %v1907 = vperm.slane %v1891, 0
        %v1908 = vperm.slane %v1891, 1
        %v1911 = vadd.f32 %v1892, %v1907
        %v1912 = vadd.f32 %v1893, %v1908
        %v1913 = vadd.f32 %v1894, %v1907
        %v1914 = vadd.f32 %v1895, %v1908
        %v1915 = vadd.f32 %v1896, %v1907
        %v1916 = vadd.f32 %v1897, %v1908
        %v1917 = vadd.f32 %v1898, %v1907
        %v1918 = vadd.f32 %v1899, %v1908
        %v1919 = vadd.f32 %v1900, %v1907
        %v1920 = vadd.f32 %v1901, %v1908
        %v1921 = vadd.f32 %v1902, %v1907
        %v1922 = vadd.f32 %v1903, %v1908
        %v1923 = vadd.f32 %v1904, %v1907
        %v1924 = vadd.f32 %v1905, %v1908
        %v1925 = vmax.f32 %v1911, 0.0
        %v1926 = vmax.f32 %v1912, 0.0
        %v1927 = vmax.f32 %v1913, 0.0
        %v1928 = vmax.f32 %v1914, 0.0
        %v1929 = vmax.f32 %v1915, 0.0
        %v1930 = vmax.f32 %v1916, 0.0
        %v1931 = vmax.f32 %v1917, 0.0
        %v1932 = vmax.f32 %v1918, 0.0
        %v1933 = vmax.f32 %v1919, 0.0
        %v1934 = vmax.f32 %v1920, 0.0
        %v1935 = vmax.f32 %v1921, 0.0
        %v1936 = vmax.f32 %v1922, 0.0
        %v1937 = vmax.f32 %v1923, 0.0
        %v1938 = vmax.f32 %v1924, 0.0
        %v1939 = vmin.f32 %v1925, 6.0
        %v1940 = vmin.f32 %v1926, 6.0
        %v1941 = vmin.f32 %v1927, 6.0
        %v1942 = vmin.f32 %v1928, 6.0
        %v1943 = vmin.f32 %v1929, 6.0
        %v1944 = vmin.f32 %v1930, 6.0
        %v1945 = vmin.f32 %v1931, 6.0
        %v1946 = vmin.f32 %v1932, 6.0
        %v1947 = vmin.f32 %v1933, 6.0
        %v1948 = vmin.f32 %v1934, 6.0
        %v1949 = vmin.f32 %v1935, 6.0
        %v1950 = vmin.f32 %v1936, 6.0
        %v1951 = vmin.f32 %v1937, 6.0
        %v1952 = vmin.f32 %v1938, 6.0
        %v1953 = vld [vmem:[#allocation2] sm:$0xff]
        %v1954 = vld [vmem:[#allocation2 + $0x8] sm:$0xff]
        %v1955 = vld [vmem:[#allocation2 + $0x10] sm:$0xff]
        %v1956 = vld [vmem:[#allocation2 + $0x18] sm:$0xff]
        %v1957 = vld [vmem:[#allocation2 + $0x20] sm:$0xff]
        %v1958 = vld [vmem:[#allocation2 + $0x28] sm:$0xff]
        %v1959 = vld [vmem:[#allocation2 + $0x30] sm:$0xff]
        %v1960 = vld [vmem:[#allocation2 + $0x38] sm:$0xff]
        %v1961 = vld [vmem:[#allocation2 + $0x40] sm:$0xff]
        %v1962 = vld [vmem:[#allocation2 + $0x48] sm:$0xff]
        %v1963 = vld [vmem:[#allocation2 + $0x50] sm:$0xff]
        %v1964 = vld [vmem:[#allocation2 + $0x58] sm:$0xff]
        %v1965 = vld [vmem:[#allocation2 + $0x60] sm:$0x1]
        %v1966 = vld [vmem:[#allocation2 + $0x68] sm:$0x1]
        %v1967 = vpack.c.bf16 %v1941, %v1939
        %v1968 = vpack.c.bf16 %v1942, %v1940
        %v1969 = vpack.c.bf16 %v1945, %v1943
        %v1970 = vpack.c.bf16 %v1946, %v1944
        %v1971 = vpack.c.bf16 %v1949, %v1947
        %v1972 = vpack.c.bf16 %v1950, %v1948
        %v1973 = vpack.c.bf16 %v1951, %v1951
        %v1974 = vpack.c.bf16 %v1952, %v1952
        %v1975 = vld [vmem:[%s515] sm:$0xff]
        %v1976 = vld [vmem:[%s515 + $0x8] sm:$0xff]
        %v1977 = vld [vmem:[%s515 + $0x10] sm:$0xff]
        %v1978 = vld [vmem:[%s515 + $0x18] sm:$0xff]
        %v1979 = vld [vmem:[%s515 + $0x20] sm:$0xff]
        %v1980 = vld [vmem:[%s515 + $0x28] sm:$0xff]
        %v1981 = vld [vmem:[%s515 + $0x30] sm:$0xff]
        %v1982 = vld [vmem:[%s515 + $0x38] sm:$0xff]
        %v1983 = vld [vmem:[%s515 + $0x40] sm:$0xff]
        %v1984 = vld [vmem:[%s515 + $0x48] sm:$0xff]
        %v1985 = vld [vmem:[%s515 + $0x50] sm:$0xff]
        %v1986 = vld [vmem:[%s515 + $0x58] sm:$0xff]
        %v1987 = vld [vmem:[%s515 + $0x60] sm:$0xff]
        %v1988 = vld [vmem:[%s515 + $0x68] sm:$0xff]
        %v1989 = vld [vmem:[%s515 + $0x70] sm:$0xff]
        %v1990 = vld [vmem:[%s515 + $0x78] sm:$0xff]
        %v1991 = vld [vmem:[%s515 + $0x80] sm:$0xff]
        %v1992 = vld [vmem:[%s515 + $0x88] sm:$0xff]
        %v1993 = vld [vmem:[%s515 + $0x90] sm:$0xff]
        %v1994 = vld [vmem:[%s515 + $0x98] sm:$0xff]
        %v1995 = vld [vmem:[%s515 + $0xa0] sm:$0xff]
        %v1996 = vld [vmem:[%s515 + $0xa8] sm:$0xff]
        %v1997 = vld [vmem:[%s515 + $0xb0] sm:$0xff]
        %v1998 = vld [vmem:[%s515 + $0xb8] sm:$0xff]
        %v1999 = vld [vmem:[%s515 + $0xc0] sm:$0xff]
        %v2000 = vld [vmem:[%s515 + $0xc8] sm:$0xff]
        %v2001 = vld [vmem:[%s515 + $0xd0] sm:$0xff]
        %v2002 = vld [vmem:[%s515 + $0xd8] sm:$0xff]
        %v2003 = vld [vmem:[%s515 + $0xe0] sm:$0xff]
        %v2004 = vld [vmem:[%s515 + $0xe8] sm:$0xff]
        %v2005 = vld [vmem:[%s515 + $0xf0] sm:$0xff]
        %v2006 = vld [vmem:[%s515 + $0xf8] sm:$0xff]
        %v2039 = vunpack.c.l.b16 %v1975
        %v2040 = vunpack.c.h.b16 %v1975
        %v2041 = vunpack.c.l.b16 %v1976
        %v2042 = vunpack.c.h.b16 %v1976
        %v2043 = vunpack.c.l.b16 %v1977
        %v2044 = vunpack.c.h.b16 %v1977
        %v2045 = vunpack.c.l.b16 %v1978
        %v2046 = vunpack.c.h.b16 %v1978
        %v2047 = vunpack.c.l.b16 %v1979
        %v2048 = vunpack.c.h.b16 %v1979
        %v2049 = vunpack.c.l.b16 %v1980
        %v2050 = vunpack.c.h.b16 %v1980
        %v2051 = vunpack.c.l.b16 %v1981
        %v2052 = vunpack.c.h.b16 %v1981
        %v2053 = vunpack.c.l.b16 %v1982
        %v2054 = vunpack.c.h.b16 %v1982
        %v2055 = vunpack.c.l.b16 %v1983
        %v2056 = vunpack.c.h.b16 %v1983
        %v2057 = vunpack.c.l.b16 %v1984
        %v2058 = vunpack.c.h.b16 %v1984
        %v2059 = vunpack.c.l.b16 %v1985
        %v2060 = vunpack.c.h.b16 %v1985
        %v2061 = vunpack.c.l.b16 %v1986
        %v2062 = vunpack.c.h.b16 %v1986
        %v2063 = vunpack.c.l.b16 %v1987
        %v2064 = vunpack.c.h.b16 %v1987
        %v2065 = vunpack.c.l.b16 %v1988
        %v2066 = vunpack.c.h.b16 %v1988
        %v2067 = vunpack.c.l.b16 %v1989
        %v2068 = vunpack.c.h.b16 %v1989
        %v2069 = vunpack.c.l.b16 %v1990
        %v2070 = vunpack.c.h.b16 %v1990
        %v2071 = vunpack.c.l.b16 %v1991
        %v2072 = vunpack.c.h.b16 %v1991
        %v2073 = vunpack.c.l.b16 %v1992
        %v2074 = vunpack.c.h.b16 %v1992
        %v2075 = vunpack.c.l.b16 %v1993
        %v2076 = vunpack.c.h.b16 %v1993
        %v2077 = vunpack.c.l.b16 %v1994
        %v2078 = vunpack.c.h.b16 %v1994
        %v2079 = vunpack.c.l.b16 %v1995
        %v2080 = vunpack.c.h.b16 %v1995
        %v2081 = vunpack.c.l.b16 %v1996
        %v2082 = vunpack.c.h.b16 %v1996
        %v2083 = vunpack.c.l.b16 %v1997
        %v2084 = vunpack.c.h.b16 %v1997
        %v2085 = vunpack.c.l.b16 %v1998
        %v2086 = vunpack.c.h.b16 %v1998
        %v2087 = vunpack.c.l.b16 %v1999
        %v2088 = vunpack.c.h.b16 %v1999
        %v2089 = vunpack.c.l.b16 %v2000
        %v2090 = vunpack.c.h.b16 %v2000
        %v2091 = vunpack.c.l.b16 %v2001
        %v2092 = vunpack.c.h.b16 %v2001
        %v2093 = vunpack.c.l.b16 %v2002
        %v2094 = vunpack.c.h.b16 %v2002
        %v2095 = vunpack.c.l.b16 %v2003
        %v2096 = vunpack.c.h.b16 %v2003
        %v2097 = vunpack.c.l.b16 %v2004
        %v2098 = vunpack.c.h.b16 %v2004
        %v2099 = vunpack.c.l.b16 %v2005
        %v2100 = vunpack.c.h.b16 %v2005
        %v2101 = vunpack.c.l.b16 %v2006
        %v2102 = vunpack.c.h.b16 %v2006
        %v2103 = vpack.c.b16 %v2041, %v2039
        %v2104 = vpack.c.b16 %v2042, %v2040
        %v2105 = vpack.c.b16 %v2045, %v2043
        %v2106 = vpack.c.b16 %v2046, %v2044
        %v2107 = vpack.c.b16 %v2049, %v2047
        %v2108 = vpack.c.b16 %v2050, %v2048
        %v2109 = vpack.c.b16 %v2053, %v2051
        %v2110 = vpack.c.b16 %v2054, %v2052
        %v2111 = vpack.c.b16 %v2057, %v2055
        %v2112 = vpack.c.b16 %v2058, %v2056
        %v2113 = vpack.c.b16 %v2061, %v2059
        %v2114 = vpack.c.b16 %v2062, %v2060
        %v2115 = vpack.c.b16 %v2065, %v2063
        %v2116 = vpack.c.b16 %v2066, %v2064
        %v2117 = vpack.c.b16 %v2069, %v2067
        %v2118 = vpack.c.b16 %v2070, %v2068
        %v2119 = vpack.c.b16 %v2073, %v2071
        %v2120 = vpack.c.b16 %v2074, %v2072
        %v2121 = vpack.c.b16 %v2077, %v2075
        %v2122 = vpack.c.b16 %v2078, %v2076
        %v2123 = vpack.c.b16 %v2081, %v2079
        %v2124 = vpack.c.b16 %v2082, %v2080
        %v2125 = vpack.c.b16 %v2085, %v2083
        %v2126 = vpack.c.b16 %v2086, %v2084
        %v2127 = vpack.c.b16 %v2089, %v2087
        %v2128 = vpack.c.b16 %v2090, %v2088
        %v2129 = vpack.c.b16 %v2093, %v2091
        %v2130 = vpack.c.b16 %v2094, %v2092
        %v2131 = vpack.c.b16 %v2097, %v2095
        %v2132 = vpack.c.b16 %v2098, %v2096
        %v2133 = vpack.c.b16 %v2101, %v2099
        %v2134 = vpack.c.b16 %v2102, %v2100
        %2167 = vmatpush.bf16.msra.mxu0 %v2117
        %2168 = vmatpush.bf16.msra.mxu0 %v2115
        %2169 = vmatpush.bf16.msra.mxu0 %v2113
        %2170 = vmatpush.bf16.msra.mxu0 %v2111
        %2171 = vmatpush.bf16.msra.mxu0 %v2109
        %2172 = vmatpush.bf16.msra.mxu0 %v2107
        %2173 = vmatpush.bf16.msra.mxu0 %v2105
        %2174 = vmatpush.bf16.msra.mxu0 %v2103
        %2175 = vmatmul.bf16.gmra.mxu0 %v1967
        %v2176 = vpop.f32.mrf.mxu0
        %v2177 = vadd.f32 0.0, %v2176
        %v2178 = vpop.f32.mrf.mxu0
        %v2179 = vadd.f32 0.0, %v2178
        %2180 = vmatmul.bf16.gmra.mxu0 %v1969
        %v2181 = vpop.f32.mrf.mxu0
        %v2182 = vadd.f32 0.0, %v2181
        %v2183 = vpop.f32.mrf.mxu0
        %v2184 = vadd.f32 0.0, %v2183
        %2185 = vmatmul.bf16.gmra.mxu0 %v1971
        %v2186 = vpop.f32.mrf.mxu0
        %v2187 = vadd.f32 0.0, %v2186
        %v2188 = vpop.f32.mrf.mxu0
        %v2189 = vadd.f32 0.0, %v2188
        %2190 = vmatmul.bf16.gmra.mxu0 %v1973
        %v2191 = vpop.f32.mrf.mxu0
        %v2192 = vadd.f32 0.0, %v2191
        %v2193 = vpop.f32.mrf.mxu0
        %2194 = vdwg.mxu0
        %2195 = vmatpush.bf16.msra.mxu0 %v2133
        %2196 = vmatpush.bf16.msra.mxu0 %v2131
        %2197 = vmatpush.bf16.msra.mxu0 %v2129
        %2198 = vmatpush.bf16.msra.mxu0 %v2127
        %2199 = vmatpush.bf16.msra.mxu0 %v2125
        %2200 = vmatpush.bf16.msra.mxu0 %v2123
        %2201 = vmatpush.bf16.msra.mxu0 %v2121
        %2202 = vmatpush.bf16.msra.mxu0 %v2119
        %2203 = vmatmul.bf16.gmra.mxu0 %v1968
        %v2204 = vpop.f32.mrf.mxu0
        %v2205 = vadd.f32 %v2177, %v2204
        %v2206 = vpop.f32.mrf.mxu0
        %v2207 = vadd.f32 %v2179, %v2206
        %2208 = vmatmul.bf16.gmra.mxu0 %v1970
        %v2209 = vpop.f32.mrf.mxu0
        %v2210 = vadd.f32 %v2182, %v2209
        %v2211 = vpop.f32.mrf.mxu0
        %v2212 = vadd.f32 %v2184, %v2211
        %2213 = vmatmul.bf16.gmra.mxu0 %v1972
        %v2214 = vpop.f32.mrf.mxu0
        %v2215 = vadd.f32 %v2187, %v2214
        %v2216 = vpop.f32.mrf.mxu0
        %v2217 = vadd.f32 %v2189, %v2216
        %2218 = vmatmul.bf16.gmra.mxu0 %v1974
        %v2219 = vpop.f32.mrf.mxu0
        %v2220 = vadd.f32 %v2192, %v2219
        %v2221 = vpop.f32.mrf.mxu0
        %2222 = vdwg.mxu0
        %2223 = vmatpush.bf16.msra.mxu0 %v2118
        %2224 = vmatpush.bf16.msra.mxu0 %v2116
        %2225 = vmatpush.bf16.msra.mxu0 %v2114
        %2226 = vmatpush.bf16.msra.mxu0 %v2112
        %2227 = vmatpush.bf16.msra.mxu0 %v2110
        %2228 = vmatpush.bf16.msra.mxu0 %v2108
        %2229 = vmatpush.bf16.msra.mxu0 %v2106
        %2230 = vmatpush.bf16.msra.mxu0 %v2104
        %2231 = vmatmul.bf16.gmra.mxu0 %v1967
        %v2232 = vpop.f32.mrf.mxu0
        %v2233 = vadd.f32 0.0, %v2232
        %v2234 = vpop.f32.mrf.mxu0
        %v2235 = vadd.f32 0.0, %v2234
        %2236 = vmatmul.bf16.gmra.mxu0 %v1969
        %v2237 = vpop.f32.mrf.mxu0
        %v2238 = vadd.f32 0.0, %v2237
        %v2239 = vpop.f32.mrf.mxu0
        %v2240 = vadd.f32 0.0, %v2239
        %2241 = vmatmul.bf16.gmra.mxu0 %v1971
        %v2242 = vpop.f32.mrf.mxu0
        %v2243 = vadd.f32 0.0, %v2242
        %v2244 = vpop.f32.mrf.mxu0
        %v2245 = vadd.f32 0.0, %v2244
        %2246 = vmatmul.bf16.gmra.mxu0 %v1973
        %v2247 = vpop.f32.mrf.mxu0
        %v2248 = vadd.f32 0.0, %v2247
        %v2249 = vpop.f32.mrf.mxu0
        %2250 = vdwg.mxu0
        %2251 = vmatpush.bf16.msra.mxu0 %v2134
        %2252 = vmatpush.bf16.msra.mxu0 %v2132
        %2253 = vmatpush.bf16.msra.mxu0 %v2130
        %2254 = vmatpush.bf16.msra.mxu0 %v2128
        %2255 = vmatpush.bf16.msra.mxu0 %v2126
        %2256 = vmatpush.bf16.msra.mxu0 %v2124
        %2257 = vmatpush.bf16.msra.mxu0 %v2122
        %2258 = vmatpush.bf16.msra.mxu0 %v2120
        %2259 = vmatmul.bf16.gmra.mxu0 %v1968
        %v2260 = vpop.f32.mrf.mxu0
        %v2261 = vadd.f32 %v2233, %v2260
        %v2262 = vpop.f32.mrf.mxu0
        %v2263 = vadd.f32 %v2235, %v2262
        %2264 = vmatmul.bf16.gmra.mxu0 %v1970
        %v2265 = vpop.f32.mrf.mxu0
        %v2266 = vadd.f32 %v2238, %v2265
        %v2267 = vpop.f32.mrf.mxu0
        %v2268 = vadd.f32 %v2240, %v2267
        %2269 = vmatmul.bf16.gmra.mxu0 %v1972
        %v2270 = vpop.f32.mrf.mxu0
        %v2271 = vadd.f32 %v2243, %v2270
        %v2272 = vpop.f32.mrf.mxu0
        %v2273 = vadd.f32 %v2245, %v2272
        %2274 = vmatmul.bf16.gmra.mxu0 %v1974
        %v2275 = vpop.f32.mrf.mxu0
        %v2276 = vadd.f32 %v2248, %v2275
        %v2277 = vpop.f32.mrf.mxu0
        %2278 = vdwg.mxu0
        %v2279 = vadd.f32 %v1953, %v2205
        %v2280 = vadd.f32 %v1954, %v2261
        %v2281 = vadd.f32 %v1955, %v2207
        %v2282 = vadd.f32 %v1956, %v2263
        %v2283 = vadd.f32 %v1957, %v2210
        %v2284 = vadd.f32 %v1958, %v2266
        %v2285 = vadd.f32 %v1959, %v2212
        %v2286 = vadd.f32 %v1960, %v2268
        %v2287 = vadd.f32 %v1961, %v2215
        %v2288 = vadd.f32 %v1962, %v2271
        %v2289 = vadd.f32 %v1963, %v2217
        %v2290 = vadd.f32 %v1964, %v2273
        %v2291 = vadd.f32 %v1965, %v2220
        %v2292 = vadd.f32 %v1966, %v2276
        %2293 = vst [vmem:[#allocation2] sm:$0xff] %v2279
        %2294 = vst [vmem:[#allocation2 + $0x8] sm:$0xff] %v2280
        %2295 = vst [vmem:[#allocation2 + $0x10] sm:$0xff] %v2281
        %2296 = vst [vmem:[#allocation2 + $0x18] sm:$0xff] %v2282
        %2297 = vst [vmem:[#allocation2 + $0x20] sm:$0xff] %v2283
        %2298 = vst [vmem:[#allocation2 + $0x28] sm:$0xff] %v2284
        %2299 = vst [vmem:[#allocation2 + $0x30] sm:$0xff] %v2285
        %2300 = vst [vmem:[#allocation2 + $0x38] sm:$0xff] %v2286
        %2301 = vst [vmem:[#allocation2 + $0x40] sm:$0xff] %v2287
        %2302 = vst [vmem:[#allocation2 + $0x48] sm:$0xff] %v2288
        %2303 = vst [vmem:[#allocation2 + $0x50] sm:$0xff] %v2289
        %2304 = vst [vmem:[#allocation2 + $0x58] sm:$0xff] %v2290
        %2305 = vst [vmem:[#allocation2 + $0x60] sm:$0x1] %v2291
        %2306 = vst [vmem:[#allocation2 + $0x68] sm:$0x1] %v2292
        %p2307 = scmp.eq.s32.totalorder %s26, 3
        // Predicated region
        $region107: #{mbconv_pallas.1} parent=89 // pred_check
          %p2308 = pneg %p2307
        $region108: #{mbconv_pallas.1} parent=89 // pred_check_branch
          %2310 = sbr.rel (%p2308) target = $region110
        $region109: #{mbconv_pallas.1} parent=89 // pred_region
          %v2311 = vld [vmem:[#allocation2] sm:$0xff]
          %v2312 = vld [vmem:[#allocation2 + $0x8] sm:$0xff]
          %v2313 = vld [vmem:[#allocation2 + $0x10] sm:$0xff]
          %v2314 = vld [vmem:[#allocation2 + $0x18] sm:$0xff]
          %v2315 = vld [vmem:[#allocation2 + $0x20] sm:$0xff]
          %v2316 = vld [vmem:[#allocation2 + $0x28] sm:$0xff]
          %v2317 = vld [vmem:[#allocation2 + $0x30] sm:$0xff]
          %v2318 = vld [vmem:[#allocation2 + $0x38] sm:$0xff]
          %v2319 = vld [vmem:[#allocation2 + $0x40] sm:$0xff]
          %v2320 = vld [vmem:[#allocation2 + $0x48] sm:$0xff]
          %v2321 = vld [vmem:[#allocation2 + $0x50] sm:$0xff]
          %v2322 = vld [vmem:[#allocation2 + $0x58] sm:$0xff]
          %v2323 = vld [vmem:[#allocation2 + $0x60] sm:$0x1]
          %v2324 = vld [vmem:[#allocation2 + $0x68] sm:$0x1]
          %2325 = vst [vmem:[%s9] sm:$0xff] %v2311
          %2326 = vst [vmem:[%s9 + $0x8] sm:$0xff] %v2312
          %2327 = vst [vmem:[%s9 + $0x10] sm:$0xff] %v2313
          %2328 = vst [vmem:[%s9 + $0x18] sm:$0xff] %v2314
          %2329 = vst [vmem:[%s9 + $0x20] sm:$0xff] %v2315
          %2330 = vst [vmem:[%s9 + $0x28] sm:$0xff] %v2316
          %2331 = vst [vmem:[%s9 + $0x30] sm:$0xff] %v2317
          %2332 = vst [vmem:[%s9 + $0x38] sm:$0xff] %v2318
          %2333 = vst [vmem:[%s9 + $0x40] sm:$0xff] %v2319
          %2334 = vst [vmem:[%s9 + $0x48] sm:$0xff] %v2320
          %2335 = vst [vmem:[%s9 + $0x50] sm:$0xff] %v2321
          %2336 = vst [vmem:[%s9 + $0x58] sm:$0xff] %v2322
          %2337 = vst [vmem:[%s9 + $0x60] sm:$0x1] %v2323
          %2338 = vst [vmem:[%s9 + $0x68] sm:$0x1] %v2324
        $region110: #{mbconv_pallas.1} parent=89 // pred_fallthru
          _
        // Predicated region
        $region111: #{mbconv_pallas.1} parent=89 // pred_check
          %p2339 = pneg %p263
        $region112: #{mbconv_pallas.1} parent=89 // pred_check_branch
          %2341 = sbr.rel (%p2339) target = $region114
        $region113: #{mbconv_pallas.1} parent=89 // pred_region
          _
        $region114: #{mbconv_pallas.1} parent=89 // pred_fallthru
          _
        // Predicated region
        $region115: #{mbconv_pallas.1} parent=89 // pred_check
          %p2342 = pneg %p263
        $region116: #{mbconv_pallas.1} parent=89 // pred_check_branch
          %2344 = sbr.rel (%p2342) target = $region118
        $region117: #{mbconv_pallas.1} parent=89 // pred_region
          _
        $region118: #{mbconv_pallas.1} parent=89 // pred_fallthru
          _
      $region90: #{mbconv_pallas.1} parent=5 // pred_fallthru
        _
      %p2345 = scmp.le.s32.totalorder 2, %s21
      // Predicated region
      $region119: #{mbconv_pallas.1} parent=5 // pred_check
        %p2346 = pneg %p2345
      $region120: #{mbconv_pallas.1} parent=5 // pred_check_branch
        %2348 = sbr.rel (%p2346) target = $region122
      $region121: #{mbconv_pallas.1} parent=5 // pred_region
        %s2349 = ssub.s32 %s21, 2
      $region122: #{mbconv_pallas.1} parent=5 // pred_fallthru
        _
    $region6: #{mbconv_pallas.1} parent=1 // loop_footer
      %s25 = sadd.s32 1, %s21
    $region7: #{mbconv_pallas.1} parent=1 // loop_footer_branch
      %20 = sbr.rel target = $region3
    $region8: #{mbconv_pallas.1} parent=1 // loop_exit
      _
    %2350 = vsyncpa [#allocation5], 1
    %s2351 = scalar_lea.sflag [#allocation5], 1
    %2352 = vsyncpa %s2351, 1
    %2353 = vsyncpa [#allocation7], 1
    %s2354 = scalar_lea.sflag [#allocation7], 1
    %2355 = vsyncpa %s2354, 1

</llo_original>
